<compile_context>
chip_gen: v7x
topology: tpu7x:2x2x1
jax: 0.10.0
libtpu: 0.0.40
codegen_flags: <defaults>
</compile_context>

<pallas_src>
import functools

import jax
import jax.numpy as jnp
from jax import lax
from jax.experimental import pallas as pl
from jax.experimental.pallas import tpu as pltpu

K1 = 784
K1_PAD = 896          # 7 * 128, zero-padded input-feature dim
H1, H2, H3 = 512, 256, 128
FC1_OUT = 2
FC2_OUT = 10
OUT_PAD = 128         # lane-dense output slab width


# --------------------------------------------------------------------------- #
# Kernel
# --------------------------------------------------------------------------- #
def net_kernel(x_ref,
               w1_ref, b1_ref,
               w2_ref, b2_ref,
               w3_ref, b3_ref,
               w4_ref, b4_ref,
               w5_ref, b5_ref,
               out_ref, fc1_ref):
    # --- blocks 1-3: Linear + (folded) BatchNorm + ReLU ----------------------
    # bf16 operands into the MXU, f32 accumulation.
    x = x_ref[...].astype(jnp.bfloat16)                              # (TB, 896)
    h = jnp.dot(x, w1_ref[...], preferred_element_type=jnp.float32) + b1_ref[...]
    h = jnp.maximum(h, 0.0).astype(jnp.bfloat16)                     # (TB, 512)

    h = jnp.dot(h, w2_ref[...], preferred_element_type=jnp.float32) + b2_ref[...]
    h = jnp.maximum(h, 0.0).astype(jnp.bfloat16)                     # (TB, 256)

    h = jnp.dot(h, w3_ref[...], preferred_element_type=jnp.float32) + b3_ref[...]
    h = jnp.maximum(h, 0.0).astype(jnp.bfloat16)                     # (TB, 128)

    # --- block 4: Linear(128,2), zero-padded to 128 output lanes -------------
    fc1 = jnp.dot(h, w4_ref[...], preferred_element_type=jnp.float32) + b4_ref[...]
    fc1_ref[...] = fc1          # lanes 0..1 real, 2..127 exactly zero (TB, 128)

    # --- fc2: Linear(2,10) + Softmax(dim=1) -----------------------------------
    # Contraction dim is 2 -> do it on the VPU with broadcasts instead of MXU.
    w5 = w5_ref[...]                                                  # (2, 128)
    logits = (fc1[:, 0:1] * w5[0:1, :]
              + fc1[:, 1:2] * w5[1:2, :]
              + b5_ref[...])                                          # (TB, 128)
    lane = lax.broadcasted_iota(jnp.int32, logits.shape, 1)
    valid = lane < FC2_OUT
    m = jnp.max(jnp.where(valid, logits, jnp.float32(-1e30)), axis=1, keepdims=True)
    e = jnp.where(valid, jnp.exp(logits - m), 0.0)
    denom = jnp.sum(e, axis=1, keepdims=True)
    out_ref[...] = e * pl.reciprocal(denom, approx=True)             # (TB, 128)


# --------------------------------------------------------------------------- #
# Wrapper
# --------------------------------------------------------------------------- #
def _round_up(n, m):
    return ((n + m - 1) // m) * m


@functools.partial(jax.jit, static_argnames=("tb",))
def net_forward(x, kernel_params, *, tb=256):
    """x: (B, 784) float32.  Returns (out (B,10), fc1_out (B,2))."""
    B = x.shape[0]
    tb = min(tb, _round_up(max(B, 1), 8))          # batch tile (sublane multiple)
    b_pad = _round_up(B, tb)

    x_p = jnp.pad(x.astype(jnp.float32),
                  ((0, b_pad - B), (0, K1_PAD - x.shape[1])))

    (w1, b1, w2, b2, w3, b3, w4, b4, w5, b5) = kernel_params

    def resident(arr):
        # Same block index every grid step -> weight stays VMEM-resident.
        return pl.BlockSpec(arr.shape, lambda i: (0, 0))

    out_pad, fc1_pad = pl.pallas_call(
        net_kernel,
        out_shape=(jax.ShapeDtypeStruct((b_pad, OUT_PAD), jnp.float32),
                   jax.ShapeDtypeStruct((b_pad, OUT_PAD), jnp.float32)),
        grid_spec=pltpu.PrefetchScalarGridSpec(
            num_scalar_prefetch=0,
            grid=(b_pad // tb,),
            in_specs=[
                pl.BlockSpec((tb, K1_PAD), lambda i: (i, 0)),
                resident(w1), resident(b1),
                resident(w2), resident(b2),
                resident(w3), resident(b3),
                resident(w4), resident(b4),
                resident(w5), resident(b5),
            ],
            out_specs=(pl.BlockSpec((tb, OUT_PAD), lambda i: (i, 0)),
                       pl.BlockSpec((tb, OUT_PAD), lambda i: (i, 0))),
        ),
        compiler_params=pltpu.CompilerParams(
            dimension_semantics=("parallel",),
            vmem_limit_bytes=32 * 1024 * 1024,
        ),
    )(x_p, *kernel_params)

    out = out_pad[:B, :FC2_OUT]
    fc1_out = fc1_pad[:B, :FC1_OUT]
    return out, fc1_out


# --------------------------------------------------------------------------- #
# Parameters (PyTorch-equivalent raw params + kernel-side folding/packing)
# --------------------------------------------------------------------------- #
def _uniform(key, shape, bound):
    return jax.random.uniform(key, shape, jnp.float32, -bound, bound)


def make_raw_params(key):
    """PyTorch-equivalent parameters: Linear default init, BN running stats."""
    keys = jax.random.split(key, 8)

    def linear(k, fan_in, fan_out):
        kw, kb = jax.random.split(k)
        bound = 1.0 / (fan_in ** 0.5)
        w = _uniform(kw, (fan_in, fan_out), bound)   # stored (in, out) == W.T
        b = _uniform(kb, (1, fan_out), bound)
        return w, b

    def bn(k, n):
        km, kv = jax.random.split(k)
        gamma = jnp.ones((1, n), jnp.float32)
        beta = jnp.zeros((1, n), jnp.float32)
        mean = 0.1 * jax.random.normal(km, (1, n), jnp.float32)
        var = 1.0 + 0.05 * jax.random.uniform(kv, (1, n), jnp.float32)
        return gamma, beta, mean, var

    w1, b1 = linear(keys[0], K1, H1)
    w2, b2 = linear(keys[2], H1, H2)
    w3, b3 = linear(keys[4], H2, H3)
    w4, b4 = linear(keys[6], H3, FC1_OUT)
    w5, b5 = linear(keys[7], FC1_OUT, FC2_OUT)
    return dict(w1=w1, b1=b1, bn1=bn(keys[1], H1),
                w2=w2, b2=b2, bn2=bn(keys[3], H2),
                w3=w3, b3=b3, bn3=bn(keys[5], H3),
                w4=w4, b4=b4, w5=w5, b5=b5)


def _fold_bn(w, b, bn_params, eps=1e-5):
    gamma, beta, mean, var = bn_params
    scale = gamma / jnp.sqrt(var + eps)              # (1, out)
    return w * scale, b * scale + (beta - mean * scale)


def prepare_kernel_params(raw):
    """Fold eval-mode BN into the Linear layers, pad to lane-friendly shapes,
    and cast the streamed weight matrices to bf16 (f32 biases)."""
    w1, b1 = _fold_bn(raw["w1"], raw["b1"], raw["bn1"])
    w2, b2 = _fold_bn(raw["w2"], raw["b2"], raw["bn2"])
    w3, b3 = _fold_bn(raw["w3"], raw["b3"], raw["bn3"])

    w1 = jnp.pad(w1, ((0, K1_PAD - K1), (0, 0)))                    # zero rows
    w4 = jnp.pad(raw["w4"], ((0, 0), (0, OUT_PAD - FC1_OUT)))       # zero cols
    b4 = jnp.pad(raw["b4"], ((0, 0), (0, OUT_PAD - FC1_OUT)))
    w5 = jnp.pad(raw["w5"], ((0, 0), (0, OUT_PAD - FC2_OUT)))
    b5 = jnp.pad(raw["b5"], ((0, 0), (0, OUT_PAD - FC2_OUT)))

    bf = lambda a: a.astype(jnp.bfloat16)
    return (bf(w1), b1, bf(w2), b2, bf(w3), b3, bf(w4), b4,
            w5.astype(jnp.float32), b5.astype(jnp.float32))


# --------------------------------------------------------------------------- #
# Pure-JAX f32 reference (eval-mode BN), for correctness checking
# --------------------------------------------------------------------------- #
def net_reference(x, raw, eps=1e-5):
    def block(h, w, b, bn_params):
        gamma, beta, mean, var = bn_params
        h = h @ w + b
        h = (h - mean) / jnp.sqrt(var + eps) * gamma + beta
        return jnp.maximum(h, 0.0)

    h = block(x, raw["w1"], raw["b1"], raw["bn1"])
    h = block(h, raw["w2"], raw["b2"], raw["bn2"])
    h = block(h, raw["w3"], raw["b3"], raw["bn3"])
    fc1 = h @ raw["w4"] + raw["b4"]
    logits = fc1 @ raw["w5"] + raw["b5"]
    return jax.nn.softmax(logits, axis=1), fc1


# --------------------------------------------------------------------------- #
if __name__ == "__main__":
    key = jax.random.PRNGKey(0)
    kx, kp = jax.random.split(key)

    B = 16
    x = jax.random.normal(kx, (B, K1), jnp.float32)
    raw = make_raw_params(kp)
    kparams = prepare_kernel_params(raw)

    # tb=8 -> 2 grid steps: exercises the batch grid with VMEM-resident weights.
    out, fc1_out = net_forward(x, kparams, tb=8)
    jax.block_until_ready((out, fc1_out))

    assert out.shape == (B, FC2_OUT) and fc1_out.shape == (B, FC1_OUT)
    assert bool(jnp.all(jnp.isfinite(out))) and bool(jnp.all(jnp.isfinite(fc1_out)))

    # Softmax rows must sum to ~1 (approx reciprocal -> loosened tolerance).
    row_sums = jnp.sum(out, axis=1)
    assert bool(jnp.all(jnp.abs(row_sums - 1.0) < 5e-3))

    # Loose comparison against an f32 reference (bf16 weights shift numerics).
    out_ref, fc1_ref = net_reference(x, raw)
    assert bool(jnp.all(jnp.abs(out - out_ref) < 5e-2))
    assert bool(jnp.all(jnp.abs(fc1_out - fc1_ref) < 8e-2))

    print("KERNEL_OK")
</pallas_src>

<mosaic_0001>
module attributes {stable_mosaic.version = 11 : i64} {
  func.func @net_kernel(%arg0: i32, %arg1: memref<8x896xf32, #tpu.memory_space<vmem>>, %arg2: memref<896x512xbf16, #tpu.memory_space<vmem>>, %arg3: memref<1x512xf32, #tpu.memory_space<vmem>>, %arg4: memref<512x256xbf16, #tpu.memory_space<vmem>>, %arg5: memref<1x256xf32, #tpu.memory_space<vmem>>, %arg6: memref<256x128xbf16, #tpu.memory_space<vmem>>, %arg7: memref<1x128xf32, #tpu.memory_space<vmem>>, %arg8: memref<128x128xbf16, #tpu.memory_space<vmem>>, %arg9: memref<1x128xf32, #tpu.memory_space<vmem>>, %arg10: memref<2x128xf32, #tpu.memory_space<vmem>>, %arg11: memref<1x128xf32, #tpu.memory_space<vmem>>, %arg12: memref<8x128xf32, #tpu.memory_space<vmem>>, %arg13: memref<8x128xf32, #tpu.memory_space<vmem>>) attributes {dimension_semantics = [#tpu.dimension_semantics<parallel>], iteration_bounds = array<i64: 2>, scalar_prefetch = 0 : i64, scratch_operands = 0 : i64, tpu.core_type = #tpu.core_type<tc>, window_params = [{transform_indices = @transform_0, window_bounds = array<i64: 8, 896>}, {pipeline_mode = #tpu.pipeline_mode<synchronous>, transform_indices = @transform_1, window_bounds = array<i64: 896, 512>}, {pipeline_mode = #tpu.pipeline_mode<synchronous>, transform_indices = @transform_2, window_bounds = array<i64: 1, 512>}, {pipeline_mode = #tpu.pipeline_mode<synchronous>, transform_indices = @transform_3, window_bounds = array<i64: 512, 256>}, {pipeline_mode = #tpu.pipeline_mode<synchronous>, transform_indices = @transform_4, window_bounds = array<i64: 1, 256>}, {pipeline_mode = #tpu.pipeline_mode<synchronous>, transform_indices = @transform_5, window_bounds = array<i64: 256, 128>}, {pipeline_mode = #tpu.pipeline_mode<synchronous>, transform_indices = @transform_6, window_bounds = array<i64: 1, 128>}, {pipeline_mode = #tpu.pipeline_mode<synchronous>, transform_indices = @transform_7, window_bounds = array<i64: 128, 128>}, {pipeline_mode = #tpu.pipeline_mode<synchronous>, transform_indices = @transform_8, window_bounds = array<i64: 1, 128>}, {pipeline_mode = #tpu.pipeline_mode<synchronous>, transform_indices = @transform_9, window_bounds = array<i64: 2, 128>}, {pipeline_mode = #tpu.pipeline_mode<synchronous>, transform_indices = @transform_10, window_bounds = array<i64: 1, 128>}, {transform_indices = @transform_11, window_bounds = array<i64: 8, 128>}, {transform_indices = @transform_12, window_bounds = array<i64: 8, 128>}]} {
    %c0 = arith.constant 0 : index
    %c0_0 = arith.constant 0 : index
    %0 = vector.load %arg1[%c0, %c0_0] : memref<8x896xf32, #tpu.memory_space<vmem>>, vector<8x896xf32>
    %1 = arith.truncf %0 : vector<8x896xf32> to vector<8x896xbf16>
    %c0_1 = arith.constant 0 : index
    %c0_2 = arith.constant 0 : index
    %2 = vector.load %arg2[%c0_1, %c0_2] : memref<896x512xbf16, #tpu.memory_space<vmem>>, vector<896x512xbf16>
    %cst = arith.constant dense<0.000000e+00> : vector<8x512xf32>
    %3 = tpu.matmul %1, %2, %cst {dimension_numbers = #tpu.dot_dimension_numbers<[1], [0], [0], [1], [0, 0, 1, 1], [], []>} : vector<8x896xbf16>, vector<896x512xbf16>, vector<8x512xf32> -> vector<8x512xf32>
    %c0_3 = arith.constant 0 : index
    %c0_4 = arith.constant 0 : index
    %4 = vector.load %arg3[%c0_3, %c0_4] : memref<1x512xf32, #tpu.memory_space<vmem>>, vector<1x512xf32>
    %5 = vector.broadcast %4 : vector<1x512xf32> to vector<8x512xf32>
    %6 = arith.addf %3, %5 : vector<8x512xf32>
    %cst_5 = arith.constant 0.000000e+00 : f32
    %7 = vector.broadcast %cst_5 : f32 to vector<8x512xf32>
    %8 = arith.maximumf %6, %7 : vector<8x512xf32>
    %9 = arith.truncf %8 : vector<8x512xf32> to vector<8x512xbf16>
    %c0_6 = arith.constant 0 : index
    %c0_7 = arith.constant 0 : index
    %10 = vector.load %arg4[%c0_6, %c0_7] : memref<512x256xbf16, #tpu.memory_space<vmem>>, vector<512x256xbf16>
    %cst_8 = arith.constant dense<0.000000e+00> : vector<8x256xf32>
    %11 = tpu.matmul %9, %10, %cst_8 {dimension_numbers = #tpu.dot_dimension_numbers<[1], [0], [0], [1], [0, 0, 1, 1], [], []>} : vector<8x512xbf16>, vector<512x256xbf16>, vector<8x256xf32> -> vector<8x256xf32>
    %c0_9 = arith.constant 0 : index
    %c0_10 = arith.constant 0 : index
    %12 = vector.load %arg5[%c0_9, %c0_10] : memref<1x256xf32, #tpu.memory_space<vmem>>, vector<1x256xf32>
    %13 = vector.broadcast %12 : vector<1x256xf32> to vector<8x256xf32>
    %14 = arith.addf %11, %13 : vector<8x256xf32>
    %cst_11 = arith.constant 0.000000e+00 : f32
    %15 = vector.broadcast %cst_11 : f32 to vector<8x256xf32>
    %16 = arith.maximumf %14, %15 : vector<8x256xf32>
    %17 = arith.truncf %16 : vector<8x256xf32> to vector<8x256xbf16>
    %c0_12 = arith.constant 0 : index
    %c0_13 = arith.constant 0 : index
    %18 = vector.load %arg6[%c0_12, %c0_13] : memref<256x128xbf16, #tpu.memory_space<vmem>>, vector<256x128xbf16>
    %cst_14 = arith.constant dense<0.000000e+00> : vector<8x128xf32>
    %19 = tpu.matmul %17, %18, %cst_14 {dimension_numbers = #tpu.dot_dimension_numbers<[1], [0], [0], [1], [0, 0, 1, 1], [], []>} : vector<8x256xbf16>, vector<256x128xbf16>, vector<8x128xf32> -> vector<8x128xf32>
    %c0_15 = arith.constant 0 : index
    %c0_16 = arith.constant 0 : index
    %20 = vector.load %arg7[%c0_15, %c0_16] : memref<1x128xf32, #tpu.memory_space<vmem>>, vector<1x128xf32>
    %21 = vector.broadcast %20 : vector<1x128xf32> to vector<8x128xf32>
    %22 = arith.addf %19, %21 : vector<8x128xf32>
    %cst_17 = arith.constant 0.000000e+00 : f32
    %23 = vector.broadcast %cst_17 : f32 to vector<8x128xf32>
    %24 = arith.maximumf %22, %23 : vector<8x128xf32>
    %25 = arith.truncf %24 : vector<8x128xf32> to vector<8x128xbf16>
    %c0_18 = arith.constant 0 : index
    %c0_19 = arith.constant 0 : index
    %26 = vector.load %arg8[%c0_18, %c0_19] : memref<128x128xbf16, #tpu.memory_space<vmem>>, vector<128x128xbf16>
    %cst_20 = arith.constant dense<0.000000e+00> : vector<8x128xf32>
    %27 = tpu.matmul %25, %26, %cst_20 {dimension_numbers = #tpu.dot_dimension_numbers<[1], [0], [0], [1], [0, 0, 1, 1], [], []>} : vector<8x128xbf16>, vector<128x128xbf16>, vector<8x128xf32> -> vector<8x128xf32>
    %c0_21 = arith.constant 0 : index
    %c0_22 = arith.constant 0 : index
    %28 = vector.load %arg9[%c0_21, %c0_22] : memref<1x128xf32, #tpu.memory_space<vmem>>, vector<1x128xf32>
    %29 = vector.broadcast %28 : vector<1x128xf32> to vector<8x128xf32>
    %30 = arith.addf %27, %29 : vector<8x128xf32>
    %c0_23 = arith.constant 0 : index
    %c0_24 = arith.constant 0 : index
    %31 = vector.load %arg13[%c0_23, %c0_24] : memref<8x128xf32, #tpu.memory_space<vmem>>, vector<8x128xf32>
    tpu.vector_store %arg13[%c0_23, %c0_24], %30 {strides = array<i32>} : memref<8x128xf32, #tpu.memory_space<vmem>>, vector<8x128xf32>,
    %c0_25 = arith.constant 0 : index
    %c0_26 = arith.constant 0 : index
    %32 = vector.load %arg10[%c0_25, %c0_26] : memref<2x128xf32, #tpu.memory_space<vmem>>, vector<2x128xf32>
    %33 = vector.extract_strided_slice %30 {offsets = [0, 0], sizes = [8, 1], strides = [1, 1]} : vector<8x128xf32> to vector<8x1xf32>
    %34 = vector.extract_strided_slice %32 {offsets = [0, 0], sizes = [1, 128], strides = [1, 1]} : vector<2x128xf32> to vector<1x128xf32>
    %35 = vector.broadcast %33 : vector<8x1xf32> to vector<8x128xf32>
    %36 = vector.broadcast %34 : vector<1x128xf32> to vector<8x128xf32>
    %37 = arith.mulf %35, %36 : vector<8x128xf32>
    %38 = vector.extract_strided_slice %30 {offsets = [0, 1], sizes = [8, 1], strides = [1, 1]} : vector<8x128xf32> to vector<8x1xf32>
    %39 = vector.extract_strided_slice %32 {offsets = [1, 0], sizes = [1, 128], strides = [1, 1]} : vector<2x128xf32> to vector<1x128xf32>
    %40 = vector.broadcast %38 : vector<8x1xf32> to vector<8x128xf32>
    %41 = vector.broadcast %39 : vector<1x128xf32> to vector<8x128xf32>
    %42 = arith.mulf %40, %41 : vector<8x128xf32>
    %43 = arith.addf %37, %42 : vector<8x128xf32>
    %c0_27 = arith.constant 0 : index
    %c0_28 = arith.constant 0 : index
    %44 = vector.load %arg11[%c0_27, %c0_28] : memref<1x128xf32, #tpu.memory_space<vmem>>, vector<1x128xf32>
    %45 = vector.broadcast %44 : vector<1x128xf32> to vector<8x128xf32>
    %46 = arith.addf %43, %45 : vector<8x128xf32>
    %47 = tpu.iota {dimensions = array<i32: 1>} : vector<8x128xi32>
    %c10_i32 = arith.constant 10 : i32
    %48 = vector.broadcast %c10_i32 : i32 to vector<8x128xi32>
    %49 = arith.cmpi slt, %47, %48 : vector<8x128xi32>
    %cst_29 = arith.constant -1.000000e+30 : f32
    %50 = vector.broadcast %cst_29 : f32 to vector<8x128xf32>
    %51 = arith.select %49, %46, %50 : vector<8x128xi1>, vector<8x128xf32>
    %cst_30 = arith.constant dense<0xFF800000> : vector<8xf32>
    %52 = vector.multi_reduction <maximumf>, %51, %cst_30 [1] : vector<8x128xf32> to vector<8xf32>
    %53 = vector.shape_cast %52 : vector<8xf32> to vector<8x1xf32>
    %54 = vector.broadcast %53 : vector<8x1xf32> to vector<8x128xf32>
    %55 = arith.subf %46, %54 : vector<8x128xf32>
    %56 = math.exp %55 : vector<8x128xf32>
    %cst_31 = arith.constant 0.000000e+00 : f32
    %57 = vector.broadcast %cst_31 : f32 to vector<8x128xf32>
    %58 = arith.select %49, %56, %57 : vector<8x128xi1>, vector<8x128xf32>
    %cst_32 = arith.constant dense<0.000000e+00> : vector<8xf32>
    %59 = vector.multi_reduction <add>, %58, %cst_32 [1] : vector<8x128xf32> to vector<8xf32>
    %60 = vector.shape_cast %59 : vector<8xf32> to vector<8x1xf32>
    %61 = tpu.reciprocal %60 {approx = true} : vector<8x1xf32> -> vector<8x1xf32>
    %62 = vector.broadcast %61 : vector<8x1xf32> to vector<8x128xf32>
    %63 = arith.mulf %58, %62 : vector<8x128xf32>
    %c0_33 = arith.constant 0 : index
    %c0_34 = arith.constant 0 : index
    %64 = vector.load %arg12[%c0_33, %c0_34] : memref<8x128xf32, #tpu.memory_space<vmem>>, vector<8x128xf32>
    tpu.vector_store %arg12[%c0_33, %c0_34], %63 {strides = array<i32>} : memref<8x128xf32, #tpu.memory_space<vmem>>, vector<8x128xf32>,
    return
  }
  func.func @transform_0(%arg0: i32) -> (i32, i32) {
    %c0_i32 = arith.constant 0 : i32
    %c0_i32_0 = arith.constant 0 : i32
    return %arg0, %c0_i32 : i32, i32
  }
  func.func @transform_1(%arg0: i32) -> (i32, i32) {
    %c0_i32 = arith.constant 0 : i32
    %c0_i32_0 = arith.constant 0 : i32
    %c0_i32_1 = arith.constant 0 : i32
    return %c0_i32, %c0_i32_0 : i32, i32
  }
  func.func @transform_2(%arg0: i32) -> (i32, i32) {
    %c0_i32 = arith.constant 0 : i32
    %c0_i32_0 = arith.constant 0 : i32
    %c0_i32_1 = arith.constant 0 : i32
    return %c0_i32, %c0_i32_0 : i32, i32
  }
  func.func @transform_3(%arg0: i32) -> (i32, i32) {
    %c0_i32 = arith.constant 0 : i32
    %c0_i32_0 = arith.constant 0 : i32
    %c0_i32_1 = arith.constant 0 : i32
    return %c0_i32, %c0_i32_0 : i32, i32
  }
  func.func @transform_4(%arg0: i32) -> (i32, i32) {
    %c0_i32 = arith.constant 0 : i32
    %c0_i32_0 = arith.constant 0 : i32
    %c0_i32_1 = arith.constant 0 : i32
    return %c0_i32, %c0_i32_0 : i32, i32
  }
  func.func @transform_5(%arg0: i32) -> (i32, i32) {
    %c0_i32 = arith.constant 0 : i32
    %c0_i32_0 = arith.constant 0 : i32
    %c0_i32_1 = arith.constant 0 : i32
    return %c0_i32, %c0_i32_0 : i32, i32
  }
  func.func @transform_6(%arg0: i32) -> (i32, i32) {
    %c0_i32 = arith.constant 0 : i32
    %c0_i32_0 = arith.constant 0 : i32
    %c0_i32_1 = arith.constant 0 : i32
    return %c0_i32, %c0_i32_0 : i32, i32
  }
  func.func @transform_7(%arg0: i32) -> (i32, i32) {
    %c0_i32 = arith.constant 0 : i32
    %c0_i32_0 = arith.constant 0 : i32
    %c0_i32_1 = arith.constant 0 : i32
    return %c0_i32, %c0_i32_0 : i32, i32
  }
  func.func @transform_8(%arg0: i32) -> (i32, i32) {
    %c0_i32 = arith.constant 0 : i32
    %c0_i32_0 = arith.constant 0 : i32
    %c0_i32_1 = arith.constant 0 : i32
    return %c0_i32, %c0_i32_0 : i32, i32
  }
  func.func @transform_9(%arg0: i32) -> (i32, i32) {
    %c0_i32 = arith.constant 0 : i32
    %c0_i32_0 = arith.constant 0 : i32
    %c0_i32_1 = arith.constant 0 : i32
    return %c0_i32, %c0_i32_0 : i32, i32
  }
  func.func @transform_10(%arg0: i32) -> (i32, i32) {
    %c0_i32 = arith.constant 0 : i32
    %c0_i32_0 = arith.constant 0 : i32
    %c0_i32_1 = arith.constant 0 : i32
    return %c0_i32, %c0_i32_0 : i32, i32
  }
  func.func @transform_11(%arg0: i32) -> (i32, i32) {
    %c0_i32 = arith.constant 0 : i32
    %c0_i32_0 = arith.constant 0 : i32
    return %arg0, %c0_i32 : i32, i32
  }
  func.func @transform_12(%arg0: i32) -> (i32, i32) {
    %c0_i32 = arith.constant 0 : i32
    %c0_i32_0 = arith.constant 0 : i32
    return %arg0, %c0_i32 : i32, i32
  }
}

</mosaic_0001>

<llo_original>
// kernel: net_forward.1
$region0: #{net_forward.1}
  #allocation0 [shape = 'u32[]', space=smem, size = 0x4, offset = 0x4, fixed_abs, tag = 'smem constant byte address 0x4 - core index']
  #allocation1 [shape = 'u32[144,128]{1,0:T(1,128)}', space=vmem, size = 0x12000, scoped, tag = 'internal scratch']
  %s0 = inlined_call_operand.vmem [shape: f32[16,896], index: 0, kind: input, shape index: {}]
  %s1 = inlined_call_operand.hbm [shape: bf16[896,512], index: 1, kind: input, shape index: {}]
  %s2 = inlined_call_operand.vmem [shape: f32[1,512], index: 2, kind: input, shape index: {}]
  %s3 = inlined_call_operand.hbm [shape: bf16[512,256], index: 3, kind: input, shape index: {}]
  %s4 = inlined_call_operand.vmem [shape: f32[1,256], index: 4, kind: input, shape index: {}]
  %s5 = inlined_call_operand.vmem [shape: bf16[256,128], index: 5, kind: input, shape index: {}]
  %s6 = inlined_call_operand.vmem [shape: f32[1,128], index: 6, kind: input, shape index: {}]
  %s7 = inlined_call_operand.vmem [shape: bf16[128,128], index: 7, kind: input, shape index: {}]
  %s8 = inlined_call_operand.vmem [shape: f32[1,128], index: 8, kind: input, shape index: {}]
  %s9 = inlined_call_operand.vmem [shape: f32[2,128], index: 9, kind: input, shape index: {}]
  %s10 = inlined_call_operand.vmem [shape: f32[1,128], index: 10, kind: input, shape index: {}]
  %s11 = inlined_call_operand.hbm [shape: f32[16,128], index: 11, kind: output, shape index: {0}]
  %s12 = inlined_call_operand.vmem [shape: f32[16,128], index: 12, kind: output, shape index: {1}]
  %13 = xla_tuple %s11, %s12
  %s14 = sld [smem:[#allocation0]]
  $region93: #{net_forward.1} parent=0
    _
  %s16 = ssub.s32 1, %s14
  %s17 = scalar_select 0, %s16, %s14
  $region1: #{net_forward.1} parent=0
    #allocation2 [shape = 'u8[917504]{0}', space=vmem, size = 0xe0000, scoped, tag = 'input window, operand 1, single buffered']
    #allocation3 [shape = 's32[2]{0}', space=sflag, size = 0x8, scoped, tag = 'scoped memory for net_forward.1']
    #allocation4 [shape = 's32[2]{0}', space=sflag, size = 0x8, scoped, tag = 'scoped memory for net_forward.1']
    #allocation5 [shape = 'u8[262144]{0}', space=vmem, size = 0x40000, scoped, tag = 'input window, operand 3, single buffered']
    #allocation6 [shape = 's32[1]{0}', space=sflag, size = 0x4, scoped, tag = 'scoped memory for net_forward.1']
    #allocation7 [shape = 'u8[8192]{0}', space=vmem, size = 0x2000, scoped, tag = 'output window, operand 0']
    %18 = vsyncpa [#allocation3], 0
    %19 = vsyncpa [#allocation6], 0
    %20 = vsyncpa [#allocation4], 0
    %s21 = scalar_lea.sflag [#allocation4], 1
    %22 = vsyncpa %s21, 0
    loop: start=0, step=1, limit=4
    $region2: #{net_forward.1} parent=1 // loop_pre_header
      _
    $region3: #{net_forward.1} parent=1 // loop_header
      %s24 = sphi 0, %s28
      %p25 = scmp.ge.s32.totalorder %s24, 4
      %s34 = sphi 0, %s36
      %s37 = sphi 0, %s34
      %s38 = sphi 0, %s37
      %s54 = sphi 0, %s38
      %s58 = sphi 0, %s58
      %s60 = sphi 0, %s58
      %s61 = sphi 0, %s60
      %s75 = sphi 0, %s61
      %s79 = sphi 0, %s79
      %s81 = sphi 0, %s79
      %s82 = sphi 0, %s81
      %s96 = sphi 0, %s82
      %s100 = sphi 0, %s100
      %s102 = sphi 0, %s100
      %s103 = sphi 0, %s102
      %s117 = sphi 0, %s103
      %s121 = sphi 0, %s121
      %s123 = sphi 0, %s121
      %s124 = sphi 0, %s123
      %s138 = sphi 0, %s124
      %s142 = sphi 0, %s142
      %s144 = sphi 0, %s142
      %s145 = sphi 0, %s144
      %s159 = sphi 0, %s145
      %s163 = sphi 0, %s163
      %s165 = sphi 0, %s163
      %s166 = sphi 0, %s165
      %s180 = sphi 0, %s166
      %s184 = sphi 0, %s184
      %s186 = sphi 0, %s184
      %s187 = sphi 0, %s186
      %s201 = sphi 0, %s187
      %s205 = sphi 0, %s205
      %s207 = sphi 0, %s205
      %s208 = sphi 0, %s207
      %s222 = sphi 0, %s208
      %s226 = sphi 0, %s226
      %s228 = sphi 0, %s226
      %s229 = sphi 0, %s228
      %s243 = sphi 0, %s229
      %s247 = sphi 0, %s247
      %s249 = sphi 0, %s247
      %s250 = sphi 0, %s249
      %s264 = sphi 0, %s250
      %s270 = sphi 0, %s272
      %s273 = sphi 0, %s270
      %s274 = sphi 0, %s273
      %s290 = sphi 0, %s274
      %s296 = sphi 0, %s298
      %s299 = sphi 0, %s296
      %s300 = sphi 0, %s299
      %s316 = sphi 0, %s300
    $region4: #{net_forward.1} parent=1 // loop_header_branch
      %27 = sbr.rel (%p25) target = $region8
    $region5: #{net_forward.1} parent=1 // loop_body
      %s29 = ssub.s32 %s24, 1
      %s30 = ssub.s32 %s24, 2
      %s31 = sadd.s32 %s24, 1
      %s32 = ssub.s32 %s24, %s31
      %p33 = scmp.eq.s32.totalorder %s32, 0
      %s35 = sadd.s32 %s34, 1
      %s36 = scalar_select %p33, %s34, %s35
      %p39 = pneg %p33
      %p40 = scmp.eq.s32.totalorder %s24, 1
      %p41 = por %p39, %p40
      %p42 = scmp.ne.s32.totalorder %s34, %s37
      %p43 = scmp.eq.s32.totalorder %s24, 0
      %p44 = por %p42, %p43
      %p45 = scmp.ne.s32.totalorder %s34, %s37
      %p46 = scmp.eq.s32.totalorder %s29, 1
      %p47 = por %p45, %p46
      %p48 = scmp.ne.s32.totalorder %s37, %s38
      %p49 = scmp.eq.s32.totalorder %s29, 0
      %p50 = por %p48, %p49
      %p51 = scmp.ne.s32.totalorder %s37, %s38
      %p52 = scmp.eq.s32.totalorder %s30, 1
      %p53 = por %p51, %p52
      %p55 = scmp.ne.s32.totalorder %s38, %s54
      %p56 = scmp.eq.s32.totalorder %s30, 0
      %p57 = por %p55, %p56
      %s59 = sadd.s32 %s58, 1
      %p62 = scmp.eq.s32.totalorder %s24, 1
      %p63 = scmp.ne.s32.totalorder %s58, %s60
      %p64 = scmp.eq.s32.totalorder %s24, 0
      %p65 = por %p63, %p64
      %p66 = scmp.ne.s32.totalorder %s58, %s60
      %p67 = scmp.eq.s32.totalorder %s29, 1
      %p68 = por %p66, %p67
      %p69 = scmp.ne.s32.totalorder %s60, %s61
      %p70 = scmp.eq.s32.totalorder %s29, 0
      %p71 = por %p69, %p70
      %p72 = scmp.ne.s32.totalorder %s60, %s61
      %p73 = scmp.eq.s32.totalorder %s30, 1
      %p74 = por %p72, %p73
      %p76 = scmp.ne.s32.totalorder %s61, %s75
      %p77 = scmp.eq.s32.totalorder %s30, 0
      %p78 = por %p76, %p77
      %s80 = sadd.s32 %s79, 1
      %p83 = scmp.eq.s32.totalorder %s24, 1
      %p84 = scmp.ne.s32.totalorder %s79, %s81
      %p85 = scmp.eq.s32.totalorder %s24, 0
      %p86 = por %p84, %p85
      %p87 = scmp.ne.s32.totalorder %s79, %s81
      %p88 = scmp.eq.s32.totalorder %s29, 1
      %p89 = por %p87, %p88
      %p90 = scmp.ne.s32.totalorder %s81, %s82
      %p91 = scmp.eq.s32.totalorder %s29, 0
      %p92 = por %p90, %p91
      %p93 = scmp.ne.s32.totalorder %s81, %s82
      %p94 = scmp.eq.s32.totalorder %s30, 1
      %p95 = por %p93, %p94
      %p97 = scmp.ne.s32.totalorder %s82, %s96
      %p98 = scmp.eq.s32.totalorder %s30, 0
      %p99 = por %p97, %p98
      %s101 = sadd.s32 %s100, 1
      %p104 = scmp.eq.s32.totalorder %s24, 1
      %p105 = scmp.ne.s32.totalorder %s100, %s102
      %p106 = scmp.eq.s32.totalorder %s24, 0
      %p107 = por %p105, %p106
      %p108 = scmp.ne.s32.totalorder %s100, %s102
      %p109 = scmp.eq.s32.totalorder %s29, 1
      %p110 = por %p108, %p109
      %p111 = scmp.ne.s32.totalorder %s102, %s103
      %p112 = scmp.eq.s32.totalorder %s29, 0
      %p113 = por %p111, %p112
      %p114 = scmp.ne.s32.totalorder %s102, %s103
      %p115 = scmp.eq.s32.totalorder %s30, 1
      %p116 = por %p114, %p115
      %p118 = scmp.ne.s32.totalorder %s103, %s117
      %p119 = scmp.eq.s32.totalorder %s30, 0
      %p120 = por %p118, %p119
      %s122 = sadd.s32 %s121, 1
      %p125 = scmp.eq.s32.totalorder %s24, 1
      %p126 = scmp.ne.s32.totalorder %s121, %s123
      %p127 = scmp.eq.s32.totalorder %s24, 0
      %p128 = por %p126, %p127
      %p129 = scmp.ne.s32.totalorder %s121, %s123
      %p130 = scmp.eq.s32.totalorder %s29, 1
      %p131 = por %p129, %p130
      %p132 = scmp.ne.s32.totalorder %s123, %s124
      %p133 = scmp.eq.s32.totalorder %s29, 0
      %p134 = por %p132, %p133
      %p135 = scmp.ne.s32.totalorder %s123, %s124
      %p136 = scmp.eq.s32.totalorder %s30, 1
      %p137 = por %p135, %p136
      %p139 = scmp.ne.s32.totalorder %s124, %s138
      %p140 = scmp.eq.s32.totalorder %s30, 0
      %p141 = por %p139, %p140
      %s143 = sadd.s32 %s142, 1
      %p146 = scmp.eq.s32.totalorder %s24, 1
      %p147 = scmp.ne.s32.totalorder %s142, %s144
      %p148 = scmp.eq.s32.totalorder %s24, 0
      %p149 = por %p147, %p148
      %p150 = scmp.ne.s32.totalorder %s142, %s144
      %p151 = scmp.eq.s32.totalorder %s29, 1
      %p152 = por %p150, %p151
      %p153 = scmp.ne.s32.totalorder %s144, %s145
      %p154 = scmp.eq.s32.totalorder %s29, 0
      %p155 = por %p153, %p154
      %p156 = scmp.ne.s32.totalorder %s144, %s145
      %p157 = scmp.eq.s32.totalorder %s30, 1
      %p158 = por %p156, %p157
      %p160 = scmp.ne.s32.totalorder %s145, %s159
      %p161 = scmp.eq.s32.totalorder %s30, 0
      %p162 = por %p160, %p161
      %s164 = sadd.s32 %s163, 1
      %p167 = scmp.eq.s32.totalorder %s24, 1
      %p168 = scmp.ne.s32.totalorder %s163, %s165
      %p169 = scmp.eq.s32.totalorder %s24, 0
      %p170 = por %p168, %p169
      %p171 = scmp.ne.s32.totalorder %s163, %s165
      %p172 = scmp.eq.s32.totalorder %s29, 1
      %p173 = por %p171, %p172
      %p174 = scmp.ne.s32.totalorder %s165, %s166
      %p175 = scmp.eq.s32.totalorder %s29, 0
      %p176 = por %p174, %p175
      %p177 = scmp.ne.s32.totalorder %s165, %s166
      %p178 = scmp.eq.s32.totalorder %s30, 1
      %p179 = por %p177, %p178
      %p181 = scmp.ne.s32.totalorder %s166, %s180
      %p182 = scmp.eq.s32.totalorder %s30, 0
      %p183 = por %p181, %p182
      %s185 = sadd.s32 %s184, 1
      %p188 = scmp.eq.s32.totalorder %s24, 1
      %p189 = scmp.ne.s32.totalorder %s184, %s186
      %p190 = scmp.eq.s32.totalorder %s24, 0
      %p191 = por %p189, %p190
      %p192 = scmp.ne.s32.totalorder %s184, %s186
      %p193 = scmp.eq.s32.totalorder %s29, 1
      %p194 = por %p192, %p193
      %p195 = scmp.ne.s32.totalorder %s186, %s187
      %p196 = scmp.eq.s32.totalorder %s29, 0
      %p197 = por %p195, %p196
      %p198 = scmp.ne.s32.totalorder %s186, %s187
      %p199 = scmp.eq.s32.totalorder %s30, 1
      %p200 = por %p198, %p199
      %p202 = scmp.ne.s32.totalorder %s187, %s201
      %p203 = scmp.eq.s32.totalorder %s30, 0
      %p204 = por %p202, %p203
      %s206 = sadd.s32 %s205, 1
      %p209 = scmp.eq.s32.totalorder %s24, 1
      %p210 = scmp.ne.s32.totalorder %s205, %s207
      %p211 = scmp.eq.s32.totalorder %s24, 0
      %p212 = por %p210, %p211
      %p213 = scmp.ne.s32.totalorder %s205, %s207
      %p214 = scmp.eq.s32.totalorder %s29, 1
      %p215 = por %p213, %p214
      %p216 = scmp.ne.s32.totalorder %s207, %s208
      %p217 = scmp.eq.s32.totalorder %s29, 0
      %p218 = por %p216, %p217
      %p219 = scmp.ne.s32.totalorder %s207, %s208
      %p220 = scmp.eq.s32.totalorder %s30, 1
      %p221 = por %p219, %p220
      %p223 = scmp.ne.s32.totalorder %s208, %s222
      %p224 = scmp.eq.s32.totalorder %s30, 0
      %p225 = por %p223, %p224
      %s227 = sadd.s32 %s226, 1
      %p230 = scmp.eq.s32.totalorder %s24, 1
      %p231 = scmp.ne.s32.totalorder %s226, %s228
      %p232 = scmp.eq.s32.totalorder %s24, 0
      %p233 = por %p231, %p232
      %p234 = scmp.ne.s32.totalorder %s226, %s228
      %p235 = scmp.eq.s32.totalorder %s29, 1
      %p236 = por %p234, %p235
      %p237 = scmp.ne.s32.totalorder %s228, %s229
      %p238 = scmp.eq.s32.totalorder %s29, 0
      %p239 = por %p237, %p238
      %p240 = scmp.ne.s32.totalorder %s228, %s229
      %p241 = scmp.eq.s32.totalorder %s30, 1
      %p242 = por %p240, %p241
      %p244 = scmp.ne.s32.totalorder %s229, %s243
      %p245 = scmp.eq.s32.totalorder %s30, 0
      %p246 = por %p244, %p245
      %s248 = sadd.s32 %s247, 1
      %p251 = scmp.eq.s32.totalorder %s24, 1
      %p252 = scmp.ne.s32.totalorder %s247, %s249
      %p253 = scmp.eq.s32.totalorder %s24, 0
      %p254 = por %p252, %p253
      %p255 = scmp.ne.s32.totalorder %s247, %s249
      %p256 = scmp.eq.s32.totalorder %s29, 1
      %p257 = por %p255, %p256
      %p258 = scmp.ne.s32.totalorder %s249, %s250
      %p259 = scmp.eq.s32.totalorder %s29, 0
      %p260 = por %p258, %p259
      %p261 = scmp.ne.s32.totalorder %s249, %s250
      %p262 = scmp.eq.s32.totalorder %s30, 1
      %p263 = por %p261, %p262
      %p265 = scmp.ne.s32.totalorder %s250, %s264
      %p266 = scmp.eq.s32.totalorder %s30, 0
      %p267 = por %p265, %p266
      %s268 = ssub.s32 %s24, %s31
      %p269 = scmp.eq.s32.totalorder %s268, 0
      %s271 = sadd.s32 %s270, 1
      %s272 = scalar_select %p269, %s270, %s271
      %p275 = pneg %p269
      %p276 = scmp.eq.s32.totalorder %s24, 1
      %p277 = por %p275, %p276
      %p278 = scmp.ne.s32.totalorder %s270, %s273
      %p279 = scmp.eq.s32.totalorder %s24, 0
      %p280 = por %p278, %p279
      %p281 = scmp.ne.s32.totalorder %s270, %s273
      %p282 = scmp.eq.s32.totalorder %s29, 1
      %p283 = por %p281, %p282
      %p284 = scmp.ne.s32.totalorder %s273, %s274
      %p285 = scmp.eq.s32.totalorder %s29, 0
      %p286 = por %p284, %p285
      %p287 = scmp.ne.s32.totalorder %s273, %s274
      %p288 = scmp.eq.s32.totalorder %s30, 1
      %p289 = por %p287, %p288
      %p291 = scmp.ne.s32.totalorder %s274, %s290
      %p292 = scmp.eq.s32.totalorder %s30, 0
      %p293 = por %p291, %p292
      %s294 = ssub.s32 %s24, %s31
      %p295 = scmp.eq.s32.totalorder %s294, 0
      %s297 = sadd.s32 %s296, 1
      %s298 = scalar_select %p295, %s296, %s297
      %p301 = pneg %p295
      %p302 = scmp.eq.s32.totalorder %s24, 1
      %p303 = por %p301, %p302
      %p304 = scmp.ne.s32.totalorder %s296, %s299
      %p305 = scmp.eq.s32.totalorder %s24, 0
      %p306 = por %p304, %p305
      %p307 = scmp.ne.s32.totalorder %s296, %s299
      %p308 = scmp.eq.s32.totalorder %s29, 1
      %p309 = por %p307, %p308
      %p310 = scmp.ne.s32.totalorder %s299, %s300
      %p311 = scmp.eq.s32.totalorder %s29, 0
      %p312 = por %p310, %p311
      %p313 = scmp.ne.s32.totalorder %s299, %s300
      %p314 = scmp.eq.s32.totalorder %s30, 1
      %p315 = por %p313, %p314
      %p317 = scmp.ne.s32.totalorder %s300, %s316
      %p318 = scmp.eq.s32.totalorder %s30, 0
      %p319 = por %p317, %p318
      %p320 = scmp.le.s32.totalorder 1, %s24
      %p321 = scmp.lt.s32.totalorder %s24, 3
      %p322 = pnand %p320, %p321
      %p323 = pneg %p322
      // Predicated region
      $region9: #{net_forward.1} parent=5 // pred_check
        _
      $region10: #{net_forward.1} parent=5 // pred_check_branch
        %325 = sbr.rel (%p322) target = $region12
      $region11: #{net_forward.1} parent=5 // pred_region
        %s326 = ssub.s32 %s24, 1
        // Predicated region
        $region13: #{net_forward.1} parent=11 // pred_check
          %p327 = pneg %p71
        $region14: #{net_forward.1} parent=11 // pred_check_branch
          %329 = sbr.rel (%p327) target = $region16
        $region15: #{net_forward.1} parent=11 // pred_region
          %s331 = ssub.s32 28672, 28672
          %332 = vsyncadd [#allocation3], %s331
          %s333 = sshll.u32 [#allocation2], 4
          %s334 = int_to_ptr.vmem [resolvable:$true] %s333
          %339 = dma.hbm_to_vmem [thread:$0]  %s1, 28672, %s334, [#allocation3], 256, 256, 16
        $region16: #{net_forward.1} parent=11 // pred_fallthru
          _
        // Predicated region
        $region17: #{net_forward.1} parent=11 // pred_check
          %p340 = pneg %p92
        $region18: #{net_forward.1} parent=11 // pred_check_branch
          %342 = sbr.rel (%p340) target = $region20
        $region19: #{net_forward.1} parent=11 // pred_region
          _
        $region20: #{net_forward.1} parent=11 // pred_fallthru
          _
        // Predicated region
        $region21: #{net_forward.1} parent=11 // pred_check
          %p343 = pneg %p113
        $region22: #{net_forward.1} parent=11 // pred_check_branch
          %345 = sbr.rel (%p343) target = $region24
        $region23: #{net_forward.1} parent=11 // pred_region
          %s347 = ssub.s32 8192, 8192
          %348 = vsyncadd [#allocation6], %s347
          %s349 = sshll.u32 [#allocation5], 4
          %s350 = int_to_ptr.vmem [resolvable:$true] %s349
          %355 = dma.hbm_to_vmem [thread:$0]  %s3, 8192, %s350, [#allocation6], 128, 128, 8
        $region24: #{net_forward.1} parent=11 // pred_fallthru
          _
        // Predicated region
        $region25: #{net_forward.1} parent=11 // pred_check
          %p356 = pneg %p134
        $region26: #{net_forward.1} parent=11 // pred_check_branch
          %358 = sbr.rel (%p356) target = $region28
        $region27: #{net_forward.1} parent=11 // pred_region
          _
        $region28: #{net_forward.1} parent=11 // pred_fallthru
          _
        // Predicated region
        $region29: #{net_forward.1} parent=11 // pred_check
          %p359 = pneg %p155
        $region30: #{net_forward.1} parent=11 // pred_check_branch
          %361 = sbr.rel (%p359) target = $region32
        $region31: #{net_forward.1} parent=11 // pred_region
          _
        $region32: #{net_forward.1} parent=11 // pred_fallthru
          _
        // Predicated region
        $region33: #{net_forward.1} parent=11 // pred_check
          %p362 = pneg %p176
        $region34: #{net_forward.1} parent=11 // pred_check_branch
          %364 = sbr.rel (%p362) target = $region36
        $region35: #{net_forward.1} parent=11 // pred_region
          _
        $region36: #{net_forward.1} parent=11 // pred_fallthru
          _
        // Predicated region
        $region37: #{net_forward.1} parent=11 // pred_check
          %p365 = pneg %p197
        $region38: #{net_forward.1} parent=11 // pred_check_branch
          %367 = sbr.rel (%p365) target = $region40
        $region39: #{net_forward.1} parent=11 // pred_region
          _
        $region40: #{net_forward.1} parent=11 // pred_fallthru
          _
        // Predicated region
        $region41: #{net_forward.1} parent=11 // pred_check
          %p368 = pneg %p218
        $region42: #{net_forward.1} parent=11 // pred_check_branch
          %370 = sbr.rel (%p368) target = $region44
        $region43: #{net_forward.1} parent=11 // pred_region
          _
        $region44: #{net_forward.1} parent=11 // pred_fallthru
          _
        // Predicated region
        $region45: #{net_forward.1} parent=11 // pred_check
          %p371 = pneg %p239
        $region46: #{net_forward.1} parent=11 // pred_check_branch
          %373 = sbr.rel (%p371) target = $region48
        $region47: #{net_forward.1} parent=11 // pred_region
          _
        $region48: #{net_forward.1} parent=11 // pred_fallthru
          _
        // Predicated region
        $region49: #{net_forward.1} parent=11 // pred_check
          %p374 = pneg %p260
        $region50: #{net_forward.1} parent=11 // pred_check_branch
          %376 = sbr.rel (%p374) target = $region52
        $region51: #{net_forward.1} parent=11 // pred_region
          _
        $region52: #{net_forward.1} parent=11 // pred_fallthru
          _
      $region12: #{net_forward.1} parent=5 // pred_fallthru
        _
      %p377 = scmp.lt.s32.totalorder %s24, 2
      // Predicated region
      $region53: #{net_forward.1} parent=5 // pred_check
        %p378 = pneg %p377
      $region54: #{net_forward.1} parent=5 // pred_check_branch
        %380 = sbr.rel (%p378) target = $region56
      $region55: #{net_forward.1} parent=5 // pred_region
        // Predicated region
        $region57: #{net_forward.1} parent=55 // pred_check
          %p381 = pneg %p44
        $region58: #{net_forward.1} parent=55 // pred_check_branch
          %383 = sbr.rel (%p381) target = $region60
        $region59: #{net_forward.1} parent=55 // pred_region
          %p384 = scmp.lt.s32.totalorder %s24, 1
          %s385 = scalar_select %p384, %s24, 1
          %s386 = smul.addr %s385, 7
          %s387 = smul.addr %s386, 8
          %s388 = scalar_lea.vmem %s0, %s387
        $region60: #{net_forward.1} parent=55 // pred_fallthru
          _
      $region56: #{net_forward.1} parent=5 // pred_fallthru
        _
      %p389 = scmp.le.s32.totalorder 1, %s24
      %p390 = scmp.lt.s32.totalorder %s24, 3
      %p391 = pnand %p389, %p390
      %p392 = pneg %p391
      // Predicated region
      $region61: #{net_forward.1} parent=5 // pred_check
        _
      $region62: #{net_forward.1} parent=5 // pred_check_branch
        %394 = sbr.rel (%p391) target = $region64
      $region63: #{net_forward.1} parent=5 // pred_region
        %s395 = ssub.s32 %s24, 1
        // Predicated region
        $region65: #{net_forward.1} parent=63 // pred_check
          %p396 = pneg %p71
        $region66: #{net_forward.1} parent=63 // pred_check_branch
          %398 = sbr.rel (%p396) target = $region68
        $region67: #{net_forward.1} parent=63 // pred_region
          %399 = dma.done [#allocation3], 28672
        $region68: #{net_forward.1} parent=63 // pred_fallthru
          _
        // Predicated region
        $region69: #{net_forward.1} parent=63 // pred_check
          %p400 = pneg %p113
        $region70: #{net_forward.1} parent=63 // pred_check_branch
          %402 = sbr.rel (%p400) target = $region72
        $region71: #{net_forward.1} parent=63 // pred_region
          %403 = dma.done [#allocation6], 8192
        $region72: #{net_forward.1} parent=63 // pred_fallthru
          _
        %p404 = scmp.lt.s32.totalorder %s29, 1
        %s405 = scalar_select %p404, %s29, 1
        %s406 = smul.addr %s405, 7
        %s407 = smul.addr %s406, 8
        %s408 = scalar_lea.vmem %s0, %s407
        %p409 = pneg %p50
        %p410 = pneg %p47
        %p411 = pneg %p71
        %p412 = pneg %p68
        %p413 = pneg %p92
        %p414 = pneg %p89
        %p415 = pneg %p113
        %p416 = pneg %p110
        %p417 = pneg %p134
        %p418 = pneg %p131
        %p419 = pneg %p155
        %p420 = pneg %p152
        %p421 = pneg %p176
        %p422 = pneg %p173
        %p423 = pneg %p197
        %p424 = pneg %p194
        %p425 = pneg %p218
        %p426 = pneg %p215
        %p427 = pneg %p239
        %p428 = pneg %p236
        %p429 = pneg %p260
        %p430 = pneg %p257
        %p431 = pneg %p286
        %p432 = pneg %p283
        %s433 = sand.u32 %s273, 1
        %s434 = scalar_lea.sflag [#allocation4], %s433
        %s435 = sand.u32 %s273, 1
        %s436 = smul.addr %s435, 8
        %s437 = scalar_lea.vmem [#allocation7], %s436
        %p438 = pneg %p312
        %p439 = pneg %p309
        %p440 = scmp.lt.s32.totalorder %s29, 1
        %s441 = scalar_select %p440, %s29, 1
        %s442 = smul.addr %s441, 8
        %s443 = scalar_lea.vmem %s12, %s442
        %p444 = scmp.lt.s32.totalorder %s29, 1
        %s445 = scalar_select %p444, %s29, 1
        %s446 = smul.addr %s445, 7
        %s447 = smul.addr %s446, 8
        %s448 = scalar_lea.vmem %s0, %s447
        %p449 = scmp.lt.s32.totalorder %s29, 1
        %s450 = scalar_select %p449, %s29, 1
        %s451 = smul.addr %s450, 8
        %s452 = scalar_lea.vmem %s12, %s451
        %v454 = vld [vmem:[%s448] sm:$0xff]
        %v455 = vld [vmem:[%s448 + $0x8] sm:$0xff]
        %v456 = vld [vmem:[%s448 + $0x10] sm:$0xff]
        %v457 = vld [vmem:[%s448 + $0x18] sm:$0xff]
        %v458 = vld [vmem:[%s448 + $0x20] sm:$0xff]
        %v459 = vld [vmem:[%s448 + $0x28] sm:$0xff]
        %v460 = vld [vmem:[%s448 + $0x30] sm:$0xff]
        %v461 = vpack.c.bf16 %v454, %v454
        %v462 = vpack.c.bf16 %v455, %v455
        %v463 = vpack.c.bf16 %v456, %v456
        %v464 = vpack.c.bf16 %v457, %v457
        %v465 = vpack.c.bf16 %v458, %v458
        %v466 = vpack.c.bf16 %v459, %v459
        %v467 = vpack.c.bf16 %v460, %v460
        %v468 = vld [vmem:[#allocation2] sm:$0xff]
        %v469 = vld [vmem:[#allocation2 + $0x8] sm:$0xff]
        %v470 = vld [vmem:[#allocation2 + $0x10] sm:$0xff]
        %v471 = vld [vmem:[#allocation2 + $0x18] sm:$0xff]
        %v472 = vld [vmem:[#allocation2 + $0x20] sm:$0xff]
        %v473 = vld [vmem:[#allocation2 + $0x28] sm:$0xff]
        %v474 = vld [vmem:[#allocation2 + $0x30] sm:$0xff]
        %v475 = vld [vmem:[#allocation2 + $0x38] sm:$0xff]
        %v476 = vld [vmem:[#allocation2 + $0x40] sm:$0xff]
        %v477 = vld [vmem:[#allocation2 + $0x48] sm:$0xff]
        %v478 = vld [vmem:[#allocation2 + $0x50] sm:$0xff]
        %v479 = vld [vmem:[#allocation2 + $0x58] sm:$0xff]
        %v480 = vld [vmem:[#allocation2 + $0x60] sm:$0xff]
        %v481 = vld [vmem:[#allocation2 + $0x68] sm:$0xff]
        %v482 = vld [vmem:[#allocation2 + $0x70] sm:$0xff]
        %v483 = vld [vmem:[#allocation2 + $0x78] sm:$0xff]
        %v484 = vld [vmem:[#allocation2 + $0x80] sm:$0xff]
        %v485 = vld [vmem:[#allocation2 + $0x88] sm:$0xff]
        %v486 = vld [vmem:[#allocation2 + $0x90] sm:$0xff]
        %v487 = vld [vmem:[#allocation2 + $0x98] sm:$0xff]
        %v488 = vld [vmem:[#allocation2 + $0xa0] sm:$0xff]
        %v489 = vld [vmem:[#allocation2 + $0xa8] sm:$0xff]
        %v490 = vld [vmem:[#allocation2 + $0xb0] sm:$0xff]
        %v491 = vld [vmem:[#allocation2 + $0xb8] sm:$0xff]
        %v492 = vld [vmem:[#allocation2 + $0xc0] sm:$0xff]
        %v493 = vld [vmem:[#allocation2 + $0xc8] sm:$0xff]
        %v494 = vld [vmem:[#allocation2 + $0xd0] sm:$0xff]
        %v495 = vld [vmem:[#allocation2 + $0xd8] sm:$0xff]
        %v496 = vld [vmem:[#allocation2 + $0xe0] sm:$0xff]
        %v497 = vld [vmem:[#allocation2 + $0xe8] sm:$0xff]
        %v498 = vld [vmem:[#allocation2 + $0xf0] sm:$0xff]
        %v499 = vld [vmem:[#allocation2 + $0xf8] sm:$0xff]
        %v500 = vld [vmem:[#allocation2 + $0x100] sm:$0xff]
        %v501 = vld [vmem:[#allocation2 + $0x108] sm:$0xff]
        %v502 = vld [vmem:[#allocation2 + $0x110] sm:$0xff]
        %v503 = vld [vmem:[#allocation2 + $0x118] sm:$0xff]
        %v504 = vld [vmem:[#allocation2 + $0x120] sm:$0xff]
        %v505 = vld [vmem:[#allocation2 + $0x128] sm:$0xff]
        %v506 = vld [vmem:[#allocation2 + $0x130] sm:$0xff]
        %v507 = vld [vmem:[#allocation2 + $0x138] sm:$0xff]
        %v508 = vld [vmem:[#allocation2 + $0x140] sm:$0xff]
        %v509 = vld [vmem:[#allocation2 + $0x148] sm:$0xff]
        %v510 = vld [vmem:[#allocation2 + $0x150] sm:$0xff]
        %v511 = vld [vmem:[#allocation2 + $0x158] sm:$0xff]
        %v512 = vld [vmem:[#allocation2 + $0x160] sm:$0xff]
        %v513 = vld [vmem:[#allocation2 + $0x168] sm:$0xff]
        %v514 = vld [vmem:[#allocation2 + $0x170] sm:$0xff]
        %v515 = vld [vmem:[#allocation2 + $0x178] sm:$0xff]
        %v516 = vld [vmem:[#allocation2 + $0x180] sm:$0xff]
        %v517 = vld [vmem:[#allocation2 + $0x188] sm:$0xff]
        %v518 = vld [vmem:[#allocation2 + $0x190] sm:$0xff]
        %v519 = vld [vmem:[#allocation2 + $0x198] sm:$0xff]
        %v520 = vld [vmem:[#allocation2 + $0x1a0] sm:$0xff]
        %v521 = vld [vmem:[#allocation2 + $0x1a8] sm:$0xff]
        %v522 = vld [vmem:[#allocation2 + $0x1b0] sm:$0xff]
        %v523 = vld [vmem:[#allocation2 + $0x1b8] sm:$0xff]
        %v524 = vld [vmem:[#allocation2 + $0x1c0] sm:$0xff]
        %v525 = vld [vmem:[#allocation2 + $0x1c8] sm:$0xff]
        %v526 = vld [vmem:[#allocation2 + $0x1d0] sm:$0xff]
        %v527 = vld [vmem:[#allocation2 + $0x1d8] sm:$0xff]
        %v528 = vld [vmem:[#allocation2 + $0x1e0] sm:$0xff]
        %v529 = vld [vmem:[#allocation2 + $0x1e8] sm:$0xff]
        %v530 = vld [vmem:[#allocation2 + $0x1f0] sm:$0xff]
        %v531 = vld [vmem:[#allocation2 + $0x1f8] sm:$0xff]
        %v532 = vld [vmem:[#allocation2 + $0x200] sm:$0xff]
        %v533 = vld [vmem:[#allocation2 + $0x208] sm:$0xff]
        %v534 = vld [vmem:[#allocation2 + $0x210] sm:$0xff]
        %v535 = vld [vmem:[#allocation2 + $0x218] sm:$0xff]
        %v536 = vld [vmem:[#allocation2 + $0x220] sm:$0xff]
        %v537 = vld [vmem:[#allocation2 + $0x228] sm:$0xff]
        %v538 = vld [vmem:[#allocation2 + $0x230] sm:$0xff]
        %v539 = vld [vmem:[#allocation2 + $0x238] sm:$0xff]
        %v540 = vld [vmem:[#allocation2 + $0x240] sm:$0xff]
        %v541 = vld [vmem:[#allocation2 + $0x248] sm:$0xff]
        %v542 = vld [vmem:[#allocation2 + $0x250] sm:$0xff]
        %v543 = vld [vmem:[#allocation2 + $0x258] sm:$0xff]
        %v544 = vld [vmem:[#allocation2 + $0x260] sm:$0xff]
        %v545 = vld [vmem:[#allocation2 + $0x268] sm:$0xff]
        %v546 = vld [vmem:[#allocation2 + $0x270] sm:$0xff]
        %v547 = vld [vmem:[#allocation2 + $0x278] sm:$0xff]
        %v548 = vld [vmem:[#allocation2 + $0x280] sm:$0xff]
        %v549 = vld [vmem:[#allocation2 + $0x288] sm:$0xff]
        %v550 = vld [vmem:[#allocation2 + $0x290] sm:$0xff]
        %v551 = vld [vmem:[#allocation2 + $0x298] sm:$0xff]
        %v552 = vld [vmem:[#allocation2 + $0x2a0] sm:$0xff]
        %v553 = vld [vmem:[#allocation2 + $0x2a8] sm:$0xff]
        %v554 = vld [vmem:[#allocation2 + $0x2b0] sm:$0xff]
        %v555 = vld [vmem:[#allocation2 + $0x2b8] sm:$0xff]
        %v556 = vld [vmem:[#allocation2 + $0x2c0] sm:$0xff]
        %v557 = vld [vmem:[#allocation2 + $0x2c8] sm:$0xff]
        %v558 = vld [vmem:[#allocation2 + $0x2d0] sm:$0xff]
        %v559 = vld [vmem:[#allocation2 + $0x2d8] sm:$0xff]
        %v560 = vld [vmem:[#allocation2 + $0x2e0] sm:$0xff]
        %v561 = vld [vmem:[#allocation2 + $0x2e8] sm:$0xff]
        %v562 = vld [vmem:[#allocation2 + $0x2f0] sm:$0xff]
        %v563 = vld [vmem:[#allocation2 + $0x2f8] sm:$0xff]
        %v564 = vld [vmem:[#allocation2 + $0x300] sm:$0xff]
        %v565 = vld [vmem:[#allocation2 + $0x308] sm:$0xff]
        %v566 = vld [vmem:[#allocation2 + $0x310] sm:$0xff]
        %v567 = vld [vmem:[#allocation2 + $0x318] sm:$0xff]
        %v568 = vld [vmem:[#allocation2 + $0x320] sm:$0xff]
        %v569 = vld [vmem:[#allocation2 + $0x328] sm:$0xff]
        %v570 = vld [vmem:[#allocation2 + $0x330] sm:$0xff]
        %v571 = vld [vmem:[#allocation2 + $0x338] sm:$0xff]
        %v572 = vld [vmem:[#allocation2 + $0x340] sm:$0xff]
        %v573 = vld [vmem:[#allocation2 + $0x348] sm:$0xff]
        %v574 = vld [vmem:[#allocation2 + $0x350] sm:$0xff]
        %v575 = vld [vmem:[#allocation2 + $0x358] sm:$0xff]
        %v576 = vld [vmem:[#allocation2 + $0x360] sm:$0xff]
        %v577 = vld [vmem:[#allocation2 + $0x368] sm:$0xff]
        %v578 = vld [vmem:[#allocation2 + $0x370] sm:$0xff]
        %v579 = vld [vmem:[#allocation2 + $0x378] sm:$0xff]
        %v580 = vld [vmem:[#allocation2 + $0x380] sm:$0xff]
        %v581 = vld [vmem:[#allocation2 + $0x388] sm:$0xff]
        %v582 = vld [vmem:[#allocation2 + $0x390] sm:$0xff]
        %v583 = vld [vmem:[#allocation2 + $0x398] sm:$0xff]
        %v584 = vld [vmem:[#allocation2 + $0x3a0] sm:$0xff]
        %v585 = vld [vmem:[#allocation2 + $0x3a8] sm:$0xff]
        %v586 = vld [vmem:[#allocation2 + $0x3b0] sm:$0xff]
        %v587 = vld [vmem:[#allocation2 + $0x3b8] sm:$0xff]
        %v588 = vld [vmem:[#allocation2 + $0x3c0] sm:$0xff]
        %v589 = vld [vmem:[#allocation2 + $0x3c8] sm:$0xff]
        %v590 = vld [vmem:[#allocation2 + $0x3d0] sm:$0xff]
        %v591 = vld [vmem:[#allocation2 + $0x3d8] sm:$0xff]
        %v592 = vld [vmem:[#allocation2 + $0x3e0] sm:$0xff]
        %v593 = vld [vmem:[#allocation2 + $0x3e8] sm:$0xff]
        %v594 = vld [vmem:[#allocation2 + $0x3f0] sm:$0xff]
        %v595 = vld [vmem:[#allocation2 + $0x3f8] sm:$0xff]
        %v596 = vld [vmem:[#allocation2 + $0x400] sm:$0xff]
        %v597 = vld [vmem:[#allocation2 + $0x408] sm:$0xff]
        %v598 = vld [vmem:[#allocation2 + $0x410] sm:$0xff]
        %v599 = vld [vmem:[#allocation2 + $0x418] sm:$0xff]
        %v600 = vld [vmem:[#allocation2 + $0x420] sm:$0xff]
        %v601 = vld [vmem:[#allocation2 + $0x428] sm:$0xff]
        %v602 = vld [vmem:[#allocation2 + $0x430] sm:$0xff]
        %v603 = vld [vmem:[#allocation2 + $0x438] sm:$0xff]
        %v604 = vld [vmem:[#allocation2 + $0x440] sm:$0xff]
        %v605 = vld [vmem:[#allocation2 + $0x448] sm:$0xff]
        %v606 = vld [vmem:[#allocation2 + $0x450] sm:$0xff]
        %v607 = vld [vmem:[#allocation2 + $0x458] sm:$0xff]
        %v608 = vld [vmem:[#allocation2 + $0x460] sm:$0xff]
        %v609 = vld [vmem:[#allocation2 + $0x468] sm:$0xff]
        %v610 = vld [vmem:[#allocation2 + $0x470] sm:$0xff]
        %v611 = vld [vmem:[#allocation2 + $0x478] sm:$0xff]
        %v612 = vld [vmem:[#allocation2 + $0x480] sm:$0xff]
        %v613 = vld [vmem:[#allocation2 + $0x488] sm:$0xff]
        %v614 = vld [vmem:[#allocation2 + $0x490] sm:$0xff]
        %v615 = vld [vmem:[#allocation2 + $0x498] sm:$0xff]
        %v616 = vld [vmem:[#allocation2 + $0x4a0] sm:$0xff]
        %v617 = vld [vmem:[#allocation2 + $0x4a8] sm:$0xff]
        %v618 = vld [vmem:[#allocation2 + $0x4b0] sm:$0xff]
        %v619 = vld [vmem:[#allocation2 + $0x4b8] sm:$0xff]
        %v620 = vld [vmem:[#allocation2 + $0x4c0] sm:$0xff]
        %v621 = vld [vmem:[#allocation2 + $0x4c8] sm:$0xff]
        %v622 = vld [vmem:[#allocation2 + $0x4d0] sm:$0xff]
        %v623 = vld [vmem:[#allocation2 + $0x4d8] sm:$0xff]
        %v624 = vld [vmem:[#allocation2 + $0x4e0] sm:$0xff]
        %v625 = vld [vmem:[#allocation2 + $0x4e8] sm:$0xff]
        %v626 = vld [vmem:[#allocation2 + $0x4f0] sm:$0xff]
        %v627 = vld [vmem:[#allocation2 + $0x4f8] sm:$0xff]
        %v628 = vld [vmem:[#allocation2 + $0x500] sm:$0xff]
        %v629 = vld [vmem:[#allocation2 + $0x508] sm:$0xff]
        %v630 = vld [vmem:[#allocation2 + $0x510] sm:$0xff]
        %v631 = vld [vmem:[#allocation2 + $0x518] sm:$0xff]
        %v632 = vld [vmem:[#allocation2 + $0x520] sm:$0xff]
        %v633 = vld [vmem:[#allocation2 + $0x528] sm:$0xff]
        %v634 = vld [vmem:[#allocation2 + $0x530] sm:$0xff]
        %v635 = vld [vmem:[#allocation2 + $0x538] sm:$0xff]
        %v636 = vld [vmem:[#allocation2 + $0x540] sm:$0xff]
        %v637 = vld [vmem:[#allocation2 + $0x548] sm:$0xff]
        %v638 = vld [vmem:[#allocation2 + $0x550] sm:$0xff]
        %v639 = vld [vmem:[#allocation2 + $0x558] sm:$0xff]
        %v640 = vld [vmem:[#allocation2 + $0x560] sm:$0xff]
        %v641 = vld [vmem:[#allocation2 + $0x568] sm:$0xff]
        %v642 = vld [vmem:[#allocation2 + $0x570] sm:$0xff]
        %v643 = vld [vmem:[#allocation2 + $0x578] sm:$0xff]
        %v644 = vld [vmem:[#allocation2 + $0x580] sm:$0xff]
        %v645 = vld [vmem:[#allocation2 + $0x588] sm:$0xff]
        %v646 = vld [vmem:[#allocation2 + $0x590] sm:$0xff]
        %v647 = vld [vmem:[#allocation2 + $0x598] sm:$0xff]
        %v648 = vld [vmem:[#allocation2 + $0x5a0] sm:$0xff]
        %v649 = vld [vmem:[#allocation2 + $0x5a8] sm:$0xff]
        %v650 = vld [vmem:[#allocation2 + $0x5b0] sm:$0xff]
        %v651 = vld [vmem:[#allocation2 + $0x5b8] sm:$0xff]
        %v652 = vld [vmem:[#allocation2 + $0x5c0] sm:$0xff]
        %v653 = vld [vmem:[#allocation2 + $0x5c8] sm:$0xff]
        %v654 = vld [vmem:[#allocation2 + $0x5d0] sm:$0xff]
        %v655 = vld [vmem:[#allocation2 + $0x5d8] sm:$0xff]
        %v656 = vld [vmem:[#allocation2 + $0x5e0] sm:$0xff]
        %v657 = vld [vmem:[#allocation2 + $0x5e8] sm:$0xff]
        %v658 = vld [vmem:[#allocation2 + $0x5f0] sm:$0xff]
        %v659 = vld [vmem:[#allocation2 + $0x5f8] sm:$0xff]
        %v660 = vld [vmem:[#allocation2 + $0x600] sm:$0xff]
        %v661 = vld [vmem:[#allocation2 + $0x608] sm:$0xff]
        %v662 = vld [vmem:[#allocation2 + $0x610] sm:$0xff]
        %v663 = vld [vmem:[#allocation2 + $0x618] sm:$0xff]
        %v664 = vld [vmem:[#allocation2 + $0x620] sm:$0xff]
        %v665 = vld [vmem:[#allocation2 + $0x628] sm:$0xff]
        %v666 = vld [vmem:[#allocation2 + $0x630] sm:$0xff]
        %v667 = vld [vmem:[#allocation2 + $0x638] sm:$0xff]
        %v668 = vld [vmem:[#allocation2 + $0x640] sm:$0xff]
        %v669 = vld [vmem:[#allocation2 + $0x648] sm:$0xff]
        %v670 = vld [vmem:[#allocation2 + $0x650] sm:$0xff]
        %v671 = vld [vmem:[#allocation2 + $0x658] sm:$0xff]
        %v672 = vld [vmem:[#allocation2 + $0x660] sm:$0xff]
        %v673 = vld [vmem:[#allocation2 + $0x668] sm:$0xff]
        %v674 = vld [vmem:[#allocation2 + $0x670] sm:$0xff]
        %v675 = vld [vmem:[#allocation2 + $0x678] sm:$0xff]
        %v676 = vld [vmem:[#allocation2 + $0x680] sm:$0xff]
        %v677 = vld [vmem:[#allocation2 + $0x688] sm:$0xff]
        %v678 = vld [vmem:[#allocation2 + $0x690] sm:$0xff]
        %v679 = vld [vmem:[#allocation2 + $0x698] sm:$0xff]
        %v680 = vld [vmem:[#allocation2 + $0x6a0] sm:$0xff]
        %v681 = vld [vmem:[#allocation2 + $0x6a8] sm:$0xff]
        %v682 = vld [vmem:[#allocation2 + $0x6b0] sm:$0xff]
        %v683 = vld [vmem:[#allocation2 + $0x6b8] sm:$0xff]
        %v684 = vld [vmem:[#allocation2 + $0x6c0] sm:$0xff]
        %v685 = vld [vmem:[#allocation2 + $0x6c8] sm:$0xff]
        %v686 = vld [vmem:[#allocation2 + $0x6d0] sm:$0xff]
        %v687 = vld [vmem:[#allocation2 + $0x6d8] sm:$0xff]
        %v688 = vld [vmem:[#allocation2 + $0x6e0] sm:$0xff]
        %v689 = vld [vmem:[#allocation2 + $0x6e8] sm:$0xff]
        %v690 = vld [vmem:[#allocation2 + $0x6f0] sm:$0xff]
        %v691 = vld [vmem:[#allocation2 + $0x6f8] sm:$0xff]
        %v692 = vld [vmem:[%s2] sm:$0xf]
        %v694 = vlaneseq
        %v695 = vshrl.u32 %v694, 7
        %v696 = vsub.s32 0, %v695
        %v697 = vrot.slane %v692, %v696
        %v698 = vlaneseq
        %v699 = vshrl.u32 %v698, 7
        %v700 = vsub.s32 1, %v699
        %v701 = vrot.slane %v692, %v700
        %v702 = vlaneseq
        %v703 = vshrl.u32 %v702, 7
        %v704 = vsub.s32 2, %v703
        %v705 = vrot.slane %v692, %v704
        %v706 = vlaneseq
        %v707 = vshrl.u32 %v706, 7
        %v708 = vsub.s32 3, %v707
        %v709 = vrot.slane %v692, %v708
        %v938 = vunpack.c.l.b16 %v468
        %v939 = vunpack.c.h.b16 %v468
        %v940 = vunpack.c.l.b16 %v469
        %v941 = vunpack.c.h.b16 %v469
        %v942 = vunpack.c.l.b16 %v470
        %v943 = vunpack.c.h.b16 %v470
        %v944 = vunpack.c.l.b16 %v471
        %v945 = vunpack.c.h.b16 %v471
        %v946 = vunpack.c.l.b16 %v472
        %v947 = vunpack.c.h.b16 %v472
        %v948 = vunpack.c.l.b16 %v473
        %v949 = vunpack.c.h.b16 %v473
        %v950 = vunpack.c.l.b16 %v474
        %v951 = vunpack.c.h.b16 %v474
        %v952 = vunpack.c.l.b16 %v475
        %v953 = vunpack.c.h.b16 %v475
        %v954 = vunpack.c.l.b16 %v476
        %v955 = vunpack.c.h.b16 %v476
        %v956 = vunpack.c.l.b16 %v477
        %v957 = vunpack.c.h.b16 %v477
        %v958 = vunpack.c.l.b16 %v478
        %v959 = vunpack.c.h.b16 %v478
        %v960 = vunpack.c.l.b16 %v479
        %v961 = vunpack.c.h.b16 %v479
        %v962 = vunpack.c.l.b16 %v480
        %v963 = vunpack.c.h.b16 %v480
        %v964 = vunpack.c.l.b16 %v481
        %v965 = vunpack.c.h.b16 %v481
        %v966 = vunpack.c.l.b16 %v482
        %v967 = vunpack.c.h.b16 %v482
        %v968 = vunpack.c.l.b16 %v483
        %v969 = vunpack.c.h.b16 %v483
        %v970 = vunpack.c.l.b16 %v484
        %v971 = vunpack.c.h.b16 %v484
        %v972 = vunpack.c.l.b16 %v485
        %v973 = vunpack.c.h.b16 %v485
        %v974 = vunpack.c.l.b16 %v486
        %v975 = vunpack.c.h.b16 %v486
        %v976 = vunpack.c.l.b16 %v487
        %v977 = vunpack.c.h.b16 %v487
        %v978 = vunpack.c.l.b16 %v488
        %v979 = vunpack.c.h.b16 %v488
        %v980 = vunpack.c.l.b16 %v489
        %v981 = vunpack.c.h.b16 %v489
        %v982 = vunpack.c.l.b16 %v490
        %v983 = vunpack.c.h.b16 %v490
        %v984 = vunpack.c.l.b16 %v491
        %v985 = vunpack.c.h.b16 %v491
        %v986 = vunpack.c.l.b16 %v492
        %v987 = vunpack.c.h.b16 %v492
        %v988 = vunpack.c.l.b16 %v493
        %v989 = vunpack.c.h.b16 %v493
        %v990 = vunpack.c.l.b16 %v494
        %v991 = vunpack.c.h.b16 %v494
        %v992 = vunpack.c.l.b16 %v495
        %v993 = vunpack.c.h.b16 %v495
        %v994 = vunpack.c.l.b16 %v496
        %v995 = vunpack.c.h.b16 %v496
        %v996 = vunpack.c.l.b16 %v497
        %v997 = vunpack.c.h.b16 %v497
        %v998 = vunpack.c.l.b16 %v498
        %v999 = vunpack.c.h.b16 %v498
        %v1000 = vunpack.c.l.b16 %v499
        %v1001 = vunpack.c.h.b16 %v499
        %v1002 = vunpack.c.l.b16 %v500
        %v1003 = vunpack.c.h.b16 %v500
        %v1004 = vunpack.c.l.b16 %v501
        %v1005 = vunpack.c.h.b16 %v501
        %v1006 = vunpack.c.l.b16 %v502
        %v1007 = vunpack.c.h.b16 %v502
        %v1008 = vunpack.c.l.b16 %v503
        %v1009 = vunpack.c.h.b16 %v503
        %v1010 = vunpack.c.l.b16 %v504
        %v1011 = vunpack.c.h.b16 %v504
        %v1012 = vunpack.c.l.b16 %v505
        %v1013 = vunpack.c.h.b16 %v505
        %v1014 = vunpack.c.l.b16 %v506
        %v1015 = vunpack.c.h.b16 %v506
        %v1016 = vunpack.c.l.b16 %v507
        %v1017 = vunpack.c.h.b16 %v507
        %v1018 = vunpack.c.l.b16 %v508
        %v1019 = vunpack.c.h.b16 %v508
        %v1020 = vunpack.c.l.b16 %v509
        %v1021 = vunpack.c.h.b16 %v509
        %v1022 = vunpack.c.l.b16 %v510
        %v1023 = vunpack.c.h.b16 %v510
        %v1024 = vunpack.c.l.b16 %v511
        %v1025 = vunpack.c.h.b16 %v511
        %v1026 = vunpack.c.l.b16 %v512
        %v1027 = vunpack.c.h.b16 %v512
        %v1028 = vunpack.c.l.b16 %v513
        %v1029 = vunpack.c.h.b16 %v513
        %v1030 = vunpack.c.l.b16 %v514
        %v1031 = vunpack.c.h.b16 %v514
        %v1032 = vunpack.c.l.b16 %v515
        %v1033 = vunpack.c.h.b16 %v515
        %v1034 = vunpack.c.l.b16 %v516
        %v1035 = vunpack.c.h.b16 %v516
        %v1036 = vunpack.c.l.b16 %v517
        %v1037 = vunpack.c.h.b16 %v517
        %v1038 = vunpack.c.l.b16 %v518
        %v1039 = vunpack.c.h.b16 %v518
        %v1040 = vunpack.c.l.b16 %v519
        %v1041 = vunpack.c.h.b16 %v519
        %v1042 = vunpack.c.l.b16 %v520
        %v1043 = vunpack.c.h.b16 %v520
        %v1044 = vunpack.c.l.b16 %v521
        %v1045 = vunpack.c.h.b16 %v521
        %v1046 = vunpack.c.l.b16 %v522
        %v1047 = vunpack.c.h.b16 %v522
        %v1048 = vunpack.c.l.b16 %v523
        %v1049 = vunpack.c.h.b16 %v523
        %v1050 = vunpack.c.l.b16 %v524
        %v1051 = vunpack.c.h.b16 %v524
        %v1052 = vunpack.c.l.b16 %v525
        %v1053 = vunpack.c.h.b16 %v525
        %v1054 = vunpack.c.l.b16 %v526
        %v1055 = vunpack.c.h.b16 %v526
        %v1056 = vunpack.c.l.b16 %v527
        %v1057 = vunpack.c.h.b16 %v527
        %v1058 = vunpack.c.l.b16 %v528
        %v1059 = vunpack.c.h.b16 %v528
        %v1060 = vunpack.c.l.b16 %v529
        %v1061 = vunpack.c.h.b16 %v529
        %v1062 = vunpack.c.l.b16 %v530
        %v1063 = vunpack.c.h.b16 %v530
        %v1064 = vunpack.c.l.b16 %v531
        %v1065 = vunpack.c.h.b16 %v531
        %v1066 = vunpack.c.l.b16 %v532
        %v1067 = vunpack.c.h.b16 %v532
        %v1068 = vunpack.c.l.b16 %v533
        %v1069 = vunpack.c.h.b16 %v533
        %v1070 = vunpack.c.l.b16 %v534
        %v1071 = vunpack.c.h.b16 %v534
        %v1072 = vunpack.c.l.b16 %v535
        %v1073 = vunpack.c.h.b16 %v535
        %v1074 = vunpack.c.l.b16 %v536
        %v1075 = vunpack.c.h.b16 %v536
        %v1076 = vunpack.c.l.b16 %v537
        %v1077 = vunpack.c.h.b16 %v537
        %v1078 = vunpack.c.l.b16 %v538
        %v1079 = vunpack.c.h.b16 %v538
        %v1080 = vunpack.c.l.b16 %v539
        %v1081 = vunpack.c.h.b16 %v539
        %v1082 = vunpack.c.l.b16 %v540
        %v1083 = vunpack.c.h.b16 %v540
        %v1084 = vunpack.c.l.b16 %v541
        %v1085 = vunpack.c.h.b16 %v541
        %v1086 = vunpack.c.l.b16 %v542
        %v1087 = vunpack.c.h.b16 %v542
        %v1088 = vunpack.c.l.b16 %v543
        %v1089 = vunpack.c.h.b16 %v543
        %v1090 = vunpack.c.l.b16 %v544
        %v1091 = vunpack.c.h.b16 %v544
        %v1092 = vunpack.c.l.b16 %v545
        %v1093 = vunpack.c.h.b16 %v545
        %v1094 = vunpack.c.l.b16 %v546
        %v1095 = vunpack.c.h.b16 %v546
        %v1096 = vunpack.c.l.b16 %v547
        %v1097 = vunpack.c.h.b16 %v547
        %v1098 = vunpack.c.l.b16 %v548
        %v1099 = vunpack.c.h.b16 %v548
        %v1100 = vunpack.c.l.b16 %v549
        %v1101 = vunpack.c.h.b16 %v549
        %v1102 = vunpack.c.l.b16 %v550
        %v1103 = vunpack.c.h.b16 %v550
        %v1104 = vunpack.c.l.b16 %v551
        %v1105 = vunpack.c.h.b16 %v551
        %v1106 = vunpack.c.l.b16 %v552
        %v1107 = vunpack.c.h.b16 %v552
        %v1108 = vunpack.c.l.b16 %v553
        %v1109 = vunpack.c.h.b16 %v553
        %v1110 = vunpack.c.l.b16 %v554
        %v1111 = vunpack.c.h.b16 %v554
        %v1112 = vunpack.c.l.b16 %v555
        %v1113 = vunpack.c.h.b16 %v555
        %v1114 = vunpack.c.l.b16 %v556
        %v1115 = vunpack.c.h.b16 %v556
        %v1116 = vunpack.c.l.b16 %v557
        %v1117 = vunpack.c.h.b16 %v557
        %v1118 = vunpack.c.l.b16 %v558
        %v1119 = vunpack.c.h.b16 %v558
        %v1120 = vunpack.c.l.b16 %v559
        %v1121 = vunpack.c.h.b16 %v559
        %v1122 = vunpack.c.l.b16 %v560
        %v1123 = vunpack.c.h.b16 %v560
        %v1124 = vunpack.c.l.b16 %v561
        %v1125 = vunpack.c.h.b16 %v561
        %v1126 = vunpack.c.l.b16 %v562
        %v1127 = vunpack.c.h.b16 %v562
        %v1128 = vunpack.c.l.b16 %v563
        %v1129 = vunpack.c.h.b16 %v563
        %v1130 = vunpack.c.l.b16 %v564
        %v1131 = vunpack.c.h.b16 %v564
        %v1132 = vunpack.c.l.b16 %v565
        %v1133 = vunpack.c.h.b16 %v565
        %v1134 = vunpack.c.l.b16 %v566
        %v1135 = vunpack.c.h.b16 %v566
        %v1136 = vunpack.c.l.b16 %v567
        %v1137 = vunpack.c.h.b16 %v567
        %v1138 = vunpack.c.l.b16 %v568
        %v1139 = vunpack.c.h.b16 %v568
        %v1140 = vunpack.c.l.b16 %v569
        %v1141 = vunpack.c.h.b16 %v569
        %v1142 = vunpack.c.l.b16 %v570
        %v1143 = vunpack.c.h.b16 %v570
        %v1144 = vunpack.c.l.b16 %v571
        %v1145 = vunpack.c.h.b16 %v571
        %v1146 = vunpack.c.l.b16 %v572
        %v1147 = vunpack.c.h.b16 %v572
        %v1148 = vunpack.c.l.b16 %v573
        %v1149 = vunpack.c.h.b16 %v573
        %v1150 = vunpack.c.l.b16 %v574
        %v1151 = vunpack.c.h.b16 %v574
        %v1152 = vunpack.c.l.b16 %v575
        %v1153 = vunpack.c.h.b16 %v575
        %v1154 = vunpack.c.l.b16 %v576
        %v1155 = vunpack.c.h.b16 %v576
        %v1156 = vunpack.c.l.b16 %v577
        %v1157 = vunpack.c.h.b16 %v577
        %v1158 = vunpack.c.l.b16 %v578
        %v1159 = vunpack.c.h.b16 %v578
        %v1160 = vunpack.c.l.b16 %v579
        %v1161 = vunpack.c.h.b16 %v579
        %v1162 = vunpack.c.l.b16 %v580
        %v1163 = vunpack.c.h.b16 %v580
        %v1164 = vunpack.c.l.b16 %v581
        %v1165 = vunpack.c.h.b16 %v581
        %v1166 = vunpack.c.l.b16 %v582
        %v1167 = vunpack.c.h.b16 %v582
        %v1168 = vunpack.c.l.b16 %v583
        %v1169 = vunpack.c.h.b16 %v583
        %v1170 = vunpack.c.l.b16 %v584
        %v1171 = vunpack.c.h.b16 %v584
        %v1172 = vunpack.c.l.b16 %v585
        %v1173 = vunpack.c.h.b16 %v585
        %v1174 = vunpack.c.l.b16 %v586
        %v1175 = vunpack.c.h.b16 %v586
        %v1176 = vunpack.c.l.b16 %v587
        %v1177 = vunpack.c.h.b16 %v587
        %v1178 = vunpack.c.l.b16 %v588
        %v1179 = vunpack.c.h.b16 %v588
        %v1180 = vunpack.c.l.b16 %v589
        %v1181 = vunpack.c.h.b16 %v589
        %v1182 = vunpack.c.l.b16 %v590
        %v1183 = vunpack.c.h.b16 %v590
        %v1184 = vunpack.c.l.b16 %v591
        %v1185 = vunpack.c.h.b16 %v591
        %v1186 = vunpack.c.l.b16 %v592
        %v1187 = vunpack.c.h.b16 %v592
        %v1188 = vunpack.c.l.b16 %v593
        %v1189 = vunpack.c.h.b16 %v593
        %v1190 = vunpack.c.l.b16 %v594
        %v1191 = vunpack.c.h.b16 %v594
        %v1192 = vunpack.c.l.b16 %v595
        %v1193 = vunpack.c.h.b16 %v595
        %v1194 = vunpack.c.l.b16 %v596
        %v1195 = vunpack.c.h.b16 %v596
        %v1196 = vunpack.c.l.b16 %v597
        %v1197 = vunpack.c.h.b16 %v597
        %v1198 = vunpack.c.l.b16 %v598
        %v1199 = vunpack.c.h.b16 %v598
        %v1200 = vunpack.c.l.b16 %v599
        %v1201 = vunpack.c.h.b16 %v599
        %v1202 = vunpack.c.l.b16 %v600
        %v1203 = vunpack.c.h.b16 %v600
        %v1204 = vunpack.c.l.b16 %v601
        %v1205 = vunpack.c.h.b16 %v601
        %v1206 = vunpack.c.l.b16 %v602
        %v1207 = vunpack.c.h.b16 %v602
        %v1208 = vunpack.c.l.b16 %v603
        %v1209 = vunpack.c.h.b16 %v603
        %v1210 = vunpack.c.l.b16 %v604
        %v1211 = vunpack.c.h.b16 %v604
        %v1212 = vunpack.c.l.b16 %v605
        %v1213 = vunpack.c.h.b16 %v605
        %v1214 = vunpack.c.l.b16 %v606
        %v1215 = vunpack.c.h.b16 %v606
        %v1216 = vunpack.c.l.b16 %v607
        %v1217 = vunpack.c.h.b16 %v607
        %v1218 = vunpack.c.l.b16 %v608
        %v1219 = vunpack.c.h.b16 %v608
        %v1220 = vunpack.c.l.b16 %v609
        %v1221 = vunpack.c.h.b16 %v609
        %v1222 = vunpack.c.l.b16 %v610
        %v1223 = vunpack.c.h.b16 %v610
        %v1224 = vunpack.c.l.b16 %v611
        %v1225 = vunpack.c.h.b16 %v611
        %v1226 = vunpack.c.l.b16 %v612
        %v1227 = vunpack.c.h.b16 %v612
        %v1228 = vunpack.c.l.b16 %v613
        %v1229 = vunpack.c.h.b16 %v613
        %v1230 = vunpack.c.l.b16 %v614
        %v1231 = vunpack.c.h.b16 %v614
        %v1232 = vunpack.c.l.b16 %v615
        %v1233 = vunpack.c.h.b16 %v615
        %v1234 = vunpack.c.l.b16 %v616
        %v1235 = vunpack.c.h.b16 %v616
        %v1236 = vunpack.c.l.b16 %v617
        %v1237 = vunpack.c.h.b16 %v617
        %v1238 = vunpack.c.l.b16 %v618
        %v1239 = vunpack.c.h.b16 %v618
        %v1240 = vunpack.c.l.b16 %v619
        %v1241 = vunpack.c.h.b16 %v619
        %v1242 = vunpack.c.l.b16 %v620
        %v1243 = vunpack.c.h.b16 %v620
        %v1244 = vunpack.c.l.b16 %v621
        %v1245 = vunpack.c.h.b16 %v621
        %v1246 = vunpack.c.l.b16 %v622
        %v1247 = vunpack.c.h.b16 %v622
        %v1248 = vunpack.c.l.b16 %v623
        %v1249 = vunpack.c.h.b16 %v623
        %v1250 = vunpack.c.l.b16 %v624
        %v1251 = vunpack.c.h.b16 %v624
        %v1252 = vunpack.c.l.b16 %v625
        %v1253 = vunpack.c.h.b16 %v625
        %v1254 = vunpack.c.l.b16 %v626
        %v1255 = vunpack.c.h.b16 %v626
        %v1256 = vunpack.c.l.b16 %v627
        %v1257 = vunpack.c.h.b16 %v627
        %v1258 = vunpack.c.l.b16 %v628
        %v1259 = vunpack.c.h.b16 %v628
        %v1260 = vunpack.c.l.b16 %v629
        %v1261 = vunpack.c.h.b16 %v629
        %v1262 = vunpack.c.l.b16 %v630
        %v1263 = vunpack.c.h.b16 %v630
        %v1264 = vunpack.c.l.b16 %v631
        %v1265 = vunpack.c.h.b16 %v631
        %v1266 = vunpack.c.l.b16 %v632
        %v1267 = vunpack.c.h.b16 %v632
        %v1268 = vunpack.c.l.b16 %v633
        %v1269 = vunpack.c.h.b16 %v633
        %v1270 = vunpack.c.l.b16 %v634
        %v1271 = vunpack.c.h.b16 %v634
        %v1272 = vunpack.c.l.b16 %v635
        %v1273 = vunpack.c.h.b16 %v635
        %v1274 = vunpack.c.l.b16 %v636
        %v1275 = vunpack.c.h.b16 %v636
        %v1276 = vunpack.c.l.b16 %v637
        %v1277 = vunpack.c.h.b16 %v637
        %v1278 = vunpack.c.l.b16 %v638
        %v1279 = vunpack.c.h.b16 %v638
        %v1280 = vunpack.c.l.b16 %v639
        %v1281 = vunpack.c.h.b16 %v639
        %v1282 = vunpack.c.l.b16 %v640
        %v1283 = vunpack.c.h.b16 %v640
        %v1284 = vunpack.c.l.b16 %v641
        %v1285 = vunpack.c.h.b16 %v641
        %v1286 = vunpack.c.l.b16 %v642
        %v1287 = vunpack.c.h.b16 %v642
        %v1288 = vunpack.c.l.b16 %v643
        %v1289 = vunpack.c.h.b16 %v643
        %v1290 = vunpack.c.l.b16 %v644
        %v1291 = vunpack.c.h.b16 %v644
        %v1292 = vunpack.c.l.b16 %v645
        %v1293 = vunpack.c.h.b16 %v645
        %v1294 = vunpack.c.l.b16 %v646
        %v1295 = vunpack.c.h.b16 %v646
        %v1296 = vunpack.c.l.b16 %v647
        %v1297 = vunpack.c.h.b16 %v647
        %v1298 = vunpack.c.l.b16 %v648
        %v1299 = vunpack.c.h.b16 %v648
        %v1300 = vunpack.c.l.b16 %v649
        %v1301 = vunpack.c.h.b16 %v649
        %v1302 = vunpack.c.l.b16 %v650
        %v1303 = vunpack.c.h.b16 %v650
        %v1304 = vunpack.c.l.b16 %v651
        %v1305 = vunpack.c.h.b16 %v651
        %v1306 = vunpack.c.l.b16 %v652
        %v1307 = vunpack.c.h.b16 %v652
        %v1308 = vunpack.c.l.b16 %v653
        %v1309 = vunpack.c.h.b16 %v653
        %v1310 = vunpack.c.l.b16 %v654
        %v1311 = vunpack.c.h.b16 %v654
        %v1312 = vunpack.c.l.b16 %v655
        %v1313 = vunpack.c.h.b16 %v655
        %v1314 = vunpack.c.l.b16 %v656
        %v1315 = vunpack.c.h.b16 %v656
        %v1316 = vunpack.c.l.b16 %v657
        %v1317 = vunpack.c.h.b16 %v657
        %v1318 = vunpack.c.l.b16 %v658
        %v1319 = vunpack.c.h.b16 %v658
        %v1320 = vunpack.c.l.b16 %v659
        %v1321 = vunpack.c.h.b16 %v659
        %v1322 = vunpack.c.l.b16 %v660
        %v1323 = vunpack.c.h.b16 %v660
        %v1324 = vunpack.c.l.b16 %v661
        %v1325 = vunpack.c.h.b16 %v661
        %v1326 = vunpack.c.l.b16 %v662
        %v1327 = vunpack.c.h.b16 %v662
        %v1328 = vunpack.c.l.b16 %v663
        %v1329 = vunpack.c.h.b16 %v663
        %v1330 = vunpack.c.l.b16 %v664
        %v1331 = vunpack.c.h.b16 %v664
        %v1332 = vunpack.c.l.b16 %v665
        %v1333 = vunpack.c.h.b16 %v665
        %v1334 = vunpack.c.l.b16 %v666
        %v1335 = vunpack.c.h.b16 %v666
        %v1336 = vunpack.c.l.b16 %v667
        %v1337 = vunpack.c.h.b16 %v667
        %v1338 = vunpack.c.l.b16 %v668
        %v1339 = vunpack.c.h.b16 %v668
        %v1340 = vunpack.c.l.b16 %v669
        %v1341 = vunpack.c.h.b16 %v669
        %v1342 = vunpack.c.l.b16 %v670
        %v1343 = vunpack.c.h.b16 %v670
        %v1344 = vunpack.c.l.b16 %v671
        %v1345 = vunpack.c.h.b16 %v671
        %v1346 = vunpack.c.l.b16 %v672
        %v1347 = vunpack.c.h.b16 %v672
        %v1348 = vunpack.c.l.b16 %v673
        %v1349 = vunpack.c.h.b16 %v673
        %v1350 = vunpack.c.l.b16 %v674
        %v1351 = vunpack.c.h.b16 %v674
        %v1352 = vunpack.c.l.b16 %v675
        %v1353 = vunpack.c.h.b16 %v675
        %v1354 = vunpack.c.l.b16 %v676
        %v1355 = vunpack.c.h.b16 %v676
        %v1356 = vunpack.c.l.b16 %v677
        %v1357 = vunpack.c.h.b16 %v677
        %v1358 = vunpack.c.l.b16 %v678
        %v1359 = vunpack.c.h.b16 %v678
        %v1360 = vunpack.c.l.b16 %v679
        %v1361 = vunpack.c.h.b16 %v679
        %v1362 = vunpack.c.l.b16 %v680
        %v1363 = vunpack.c.h.b16 %v680
        %v1364 = vunpack.c.l.b16 %v681
        %v1365 = vunpack.c.h.b16 %v681
        %v1366 = vunpack.c.l.b16 %v682
        %v1367 = vunpack.c.h.b16 %v682
        %v1368 = vunpack.c.l.b16 %v683
        %v1369 = vunpack.c.h.b16 %v683
        %v1370 = vunpack.c.l.b16 %v684
        %v1371 = vunpack.c.h.b16 %v684
        %v1372 = vunpack.c.l.b16 %v685
        %v1373 = vunpack.c.h.b16 %v685
        %v1374 = vunpack.c.l.b16 %v686
        %v1375 = vunpack.c.h.b16 %v686
        %v1376 = vunpack.c.l.b16 %v687
        %v1377 = vunpack.c.h.b16 %v687
        %v1378 = vunpack.c.l.b16 %v688
        %v1379 = vunpack.c.h.b16 %v688
        %v1380 = vunpack.c.l.b16 %v689
        %v1381 = vunpack.c.h.b16 %v689
        %v1382 = vunpack.c.l.b16 %v690
        %v1383 = vunpack.c.h.b16 %v690
        %v1384 = vunpack.c.l.b16 %v691
        %v1385 = vunpack.c.h.b16 %v691
        %v1386 = vpack.c.b16 %v942, %v938
        %v1387 = vpack.c.b16 %v943, %v939
        %v1388 = vpack.c.b16 %v944, %v940
        %v1389 = vpack.c.b16 %v945, %v941
        %v1390 = vpack.c.b16 %v950, %v946
        %v1391 = vpack.c.b16 %v951, %v947
        %v1392 = vpack.c.b16 %v952, %v948
        %v1393 = vpack.c.b16 %v953, %v949
        %v1394 = vpack.c.b16 %v958, %v954
        %v1395 = vpack.c.b16 %v959, %v955
        %v1396 = vpack.c.b16 %v960, %v956
        %v1397 = vpack.c.b16 %v961, %v957
        %v1398 = vpack.c.b16 %v966, %v962
        %v1399 = vpack.c.b16 %v967, %v963
        %v1400 = vpack.c.b16 %v968, %v964
        %v1401 = vpack.c.b16 %v969, %v965
        %v1402 = vpack.c.b16 %v974, %v970
        %v1403 = vpack.c.b16 %v975, %v971
        %v1404 = vpack.c.b16 %v976, %v972
        %v1405 = vpack.c.b16 %v977, %v973
        %v1406 = vpack.c.b16 %v982, %v978
        %v1407 = vpack.c.b16 %v983, %v979
        %v1408 = vpack.c.b16 %v984, %v980
        %v1409 = vpack.c.b16 %v985, %v981
        %v1410 = vpack.c.b16 %v990, %v986
        %v1411 = vpack.c.b16 %v991, %v987
        %v1412 = vpack.c.b16 %v992, %v988
        %v1413 = vpack.c.b16 %v993, %v989
        %v1414 = vpack.c.b16 %v998, %v994
        %v1415 = vpack.c.b16 %v999, %v995
        %v1416 = vpack.c.b16 %v1000, %v996
        %v1417 = vpack.c.b16 %v1001, %v997
        %v1418 = vpack.c.b16 %v1006, %v1002
        %v1419 = vpack.c.b16 %v1007, %v1003
        %v1420 = vpack.c.b16 %v1008, %v1004
        %v1421 = vpack.c.b16 %v1009, %v1005
        %v1422 = vpack.c.b16 %v1014, %v1010
        %v1423 = vpack.c.b16 %v1015, %v1011
        %v1424 = vpack.c.b16 %v1016, %v1012
        %v1425 = vpack.c.b16 %v1017, %v1013
        %v1426 = vpack.c.b16 %v1022, %v1018
        %v1427 = vpack.c.b16 %v1023, %v1019
        %v1428 = vpack.c.b16 %v1024, %v1020
        %v1429 = vpack.c.b16 %v1025, %v1021
        %v1430 = vpack.c.b16 %v1030, %v1026
        %v1431 = vpack.c.b16 %v1031, %v1027
        %v1432 = vpack.c.b16 %v1032, %v1028
        %v1433 = vpack.c.b16 %v1033, %v1029
        %v1434 = vpack.c.b16 %v1038, %v1034
        %v1435 = vpack.c.b16 %v1039, %v1035
        %v1436 = vpack.c.b16 %v1040, %v1036
        %v1437 = vpack.c.b16 %v1041, %v1037
        %v1438 = vpack.c.b16 %v1046, %v1042
        %v1439 = vpack.c.b16 %v1047, %v1043
        %v1440 = vpack.c.b16 %v1048, %v1044
        %v1441 = vpack.c.b16 %v1049, %v1045
        %v1442 = vpack.c.b16 %v1054, %v1050
        %v1443 = vpack.c.b16 %v1055, %v1051
        %v1444 = vpack.c.b16 %v1056, %v1052
        %v1445 = vpack.c.b16 %v1057, %v1053
        %v1446 = vpack.c.b16 %v1062, %v1058
        %v1447 = vpack.c.b16 %v1063, %v1059
        %v1448 = vpack.c.b16 %v1064, %v1060
        %v1449 = vpack.c.b16 %v1065, %v1061
        %v1450 = vpack.c.b16 %v1070, %v1066
        %v1451 = vpack.c.b16 %v1071, %v1067
        %v1452 = vpack.c.b16 %v1072, %v1068
        %v1453 = vpack.c.b16 %v1073, %v1069
        %v1454 = vpack.c.b16 %v1078, %v1074
        %v1455 = vpack.c.b16 %v1079, %v1075
        %v1456 = vpack.c.b16 %v1080, %v1076
        %v1457 = vpack.c.b16 %v1081, %v1077
        %v1458 = vpack.c.b16 %v1086, %v1082
        %v1459 = vpack.c.b16 %v1087, %v1083
        %v1460 = vpack.c.b16 %v1088, %v1084
        %v1461 = vpack.c.b16 %v1089, %v1085
        %v1462 = vpack.c.b16 %v1094, %v1090
        %v1463 = vpack.c.b16 %v1095, %v1091
        %v1464 = vpack.c.b16 %v1096, %v1092
        %v1465 = vpack.c.b16 %v1097, %v1093
        %v1466 = vpack.c.b16 %v1102, %v1098
        %v1467 = vpack.c.b16 %v1103, %v1099
        %v1468 = vpack.c.b16 %v1104, %v1100
        %v1469 = vpack.c.b16 %v1105, %v1101
        %v1470 = vpack.c.b16 %v1110, %v1106
        %v1471 = vpack.c.b16 %v1111, %v1107
        %v1472 = vpack.c.b16 %v1112, %v1108
        %v1473 = vpack.c.b16 %v1113, %v1109
        %v1474 = vpack.c.b16 %v1118, %v1114
        %v1475 = vpack.c.b16 %v1119, %v1115
        %v1476 = vpack.c.b16 %v1120, %v1116
        %v1477 = vpack.c.b16 %v1121, %v1117
        %v1478 = vpack.c.b16 %v1126, %v1122
        %v1479 = vpack.c.b16 %v1127, %v1123
        %v1480 = vpack.c.b16 %v1128, %v1124
        %v1481 = vpack.c.b16 %v1129, %v1125
        %v1482 = vpack.c.b16 %v1134, %v1130
        %v1483 = vpack.c.b16 %v1135, %v1131
        %v1484 = vpack.c.b16 %v1136, %v1132
        %v1485 = vpack.c.b16 %v1137, %v1133
        %v1486 = vpack.c.b16 %v1142, %v1138
        %v1487 = vpack.c.b16 %v1143, %v1139
        %v1488 = vpack.c.b16 %v1144, %v1140
        %v1489 = vpack.c.b16 %v1145, %v1141
        %v1490 = vpack.c.b16 %v1150, %v1146
        %v1491 = vpack.c.b16 %v1151, %v1147
        %v1492 = vpack.c.b16 %v1152, %v1148
        %v1493 = vpack.c.b16 %v1153, %v1149
        %v1494 = vpack.c.b16 %v1158, %v1154
        %v1495 = vpack.c.b16 %v1159, %v1155
        %v1496 = vpack.c.b16 %v1160, %v1156
        %v1497 = vpack.c.b16 %v1161, %v1157
        %v1498 = vpack.c.b16 %v1166, %v1162
        %v1499 = vpack.c.b16 %v1167, %v1163
        %v1500 = vpack.c.b16 %v1168, %v1164
        %v1501 = vpack.c.b16 %v1169, %v1165
        %v1502 = vpack.c.b16 %v1174, %v1170
        %v1503 = vpack.c.b16 %v1175, %v1171
        %v1504 = vpack.c.b16 %v1176, %v1172
        %v1505 = vpack.c.b16 %v1177, %v1173
        %v1506 = vpack.c.b16 %v1182, %v1178
        %v1507 = vpack.c.b16 %v1183, %v1179
        %v1508 = vpack.c.b16 %v1184, %v1180
        %v1509 = vpack.c.b16 %v1185, %v1181
        %v1510 = vpack.c.b16 %v1190, %v1186
        %v1511 = vpack.c.b16 %v1191, %v1187
        %v1512 = vpack.c.b16 %v1192, %v1188
        %v1513 = vpack.c.b16 %v1193, %v1189
        %v1514 = vpack.c.b16 %v1198, %v1194
        %v1515 = vpack.c.b16 %v1199, %v1195
        %v1516 = vpack.c.b16 %v1200, %v1196
        %v1517 = vpack.c.b16 %v1201, %v1197
        %v1518 = vpack.c.b16 %v1206, %v1202
        %v1519 = vpack.c.b16 %v1207, %v1203
        %v1520 = vpack.c.b16 %v1208, %v1204
        %v1521 = vpack.c.b16 %v1209, %v1205
        %v1522 = vpack.c.b16 %v1214, %v1210
        %v1523 = vpack.c.b16 %v1215, %v1211
        %v1524 = vpack.c.b16 %v1216, %v1212
        %v1525 = vpack.c.b16 %v1217, %v1213
        %v1526 = vpack.c.b16 %v1222, %v1218
        %v1527 = vpack.c.b16 %v1223, %v1219
        %v1528 = vpack.c.b16 %v1224, %v1220
        %v1529 = vpack.c.b16 %v1225, %v1221
        %v1530 = vpack.c.b16 %v1230, %v1226
        %v1531 = vpack.c.b16 %v1231, %v1227
        %v1532 = vpack.c.b16 %v1232, %v1228
        %v1533 = vpack.c.b16 %v1233, %v1229
        %v1534 = vpack.c.b16 %v1238, %v1234
        %v1535 = vpack.c.b16 %v1239, %v1235
        %v1536 = vpack.c.b16 %v1240, %v1236
        %v1537 = vpack.c.b16 %v1241, %v1237
        %v1538 = vpack.c.b16 %v1246, %v1242
        %v1539 = vpack.c.b16 %v1247, %v1243
        %v1540 = vpack.c.b16 %v1248, %v1244
        %v1541 = vpack.c.b16 %v1249, %v1245
        %v1542 = vpack.c.b16 %v1254, %v1250
        %v1543 = vpack.c.b16 %v1255, %v1251
        %v1544 = vpack.c.b16 %v1256, %v1252
        %v1545 = vpack.c.b16 %v1257, %v1253
        %v1546 = vpack.c.b16 %v1262, %v1258
        %v1547 = vpack.c.b16 %v1263, %v1259
        %v1548 = vpack.c.b16 %v1264, %v1260
        %v1549 = vpack.c.b16 %v1265, %v1261
        %v1550 = vpack.c.b16 %v1270, %v1266
        %v1551 = vpack.c.b16 %v1271, %v1267
        %v1552 = vpack.c.b16 %v1272, %v1268
        %v1553 = vpack.c.b16 %v1273, %v1269
        %v1554 = vpack.c.b16 %v1278, %v1274
        %v1555 = vpack.c.b16 %v1279, %v1275
        %v1556 = vpack.c.b16 %v1280, %v1276
        %v1557 = vpack.c.b16 %v1281, %v1277
        %v1558 = vpack.c.b16 %v1286, %v1282
        %v1559 = vpack.c.b16 %v1287, %v1283
        %v1560 = vpack.c.b16 %v1288, %v1284
        %v1561 = vpack.c.b16 %v1289, %v1285
        %v1562 = vpack.c.b16 %v1294, %v1290
        %v1563 = vpack.c.b16 %v1295, %v1291
        %v1564 = vpack.c.b16 %v1296, %v1292
        %v1565 = vpack.c.b16 %v1297, %v1293
        %v1566 = vpack.c.b16 %v1302, %v1298
        %v1567 = vpack.c.b16 %v1303, %v1299
        %v1568 = vpack.c.b16 %v1304, %v1300
        %v1569 = vpack.c.b16 %v1305, %v1301
        %v1570 = vpack.c.b16 %v1310, %v1306
        %v1571 = vpack.c.b16 %v1311, %v1307
        %v1572 = vpack.c.b16 %v1312, %v1308
        %v1573 = vpack.c.b16 %v1313, %v1309
        %v1574 = vpack.c.b16 %v1318, %v1314
        %v1575 = vpack.c.b16 %v1319, %v1315
        %v1576 = vpack.c.b16 %v1320, %v1316
        %v1577 = vpack.c.b16 %v1321, %v1317
        %v1578 = vpack.c.b16 %v1326, %v1322
        %v1579 = vpack.c.b16 %v1327, %v1323
        %v1580 = vpack.c.b16 %v1328, %v1324
        %v1581 = vpack.c.b16 %v1329, %v1325
        %v1582 = vpack.c.b16 %v1334, %v1330
        %v1583 = vpack.c.b16 %v1335, %v1331
        %v1584 = vpack.c.b16 %v1336, %v1332
        %v1585 = vpack.c.b16 %v1337, %v1333
        %v1586 = vpack.c.b16 %v1342, %v1338
        %v1587 = vpack.c.b16 %v1343, %v1339
        %v1588 = vpack.c.b16 %v1344, %v1340
        %v1589 = vpack.c.b16 %v1345, %v1341
        %v1590 = vpack.c.b16 %v1350, %v1346
        %v1591 = vpack.c.b16 %v1351, %v1347
        %v1592 = vpack.c.b16 %v1352, %v1348
        %v1593 = vpack.c.b16 %v1353, %v1349
        %v1594 = vpack.c.b16 %v1358, %v1354
        %v1595 = vpack.c.b16 %v1359, %v1355
        %v1596 = vpack.c.b16 %v1360, %v1356
        %v1597 = vpack.c.b16 %v1361, %v1357
        %v1598 = vpack.c.b16 %v1366, %v1362
        %v1599 = vpack.c.b16 %v1367, %v1363
        %v1600 = vpack.c.b16 %v1368, %v1364
        %v1601 = vpack.c.b16 %v1369, %v1365
        %v1602 = vpack.c.b16 %v1374, %v1370
        %v1603 = vpack.c.b16 %v1375, %v1371
        %v1604 = vpack.c.b16 %v1376, %v1372
        %v1605 = vpack.c.b16 %v1377, %v1373
        %v1606 = vpack.c.b16 %v1382, %v1378
        %v1607 = vpack.c.b16 %v1383, %v1379
        %v1608 = vpack.c.b16 %v1384, %v1380
        %v1609 = vpack.c.b16 %v1385, %v1381
        %1834 = vmatprep.subr.bf16.mxu0 %v1387
        %1835 = vmatpush1.bf16.msra.mxu0 %v1386
        %1836 = vmatprep.subr.bf16.mxu0 %v1391
        %1837 = vmatpush1.bf16.msra.mxu0 %v1390
        %1838 = vmatprep.subr.bf16.mxu0 %v1395
        %1839 = vmatpush1.bf16.msra.mxu0 %v1394
        %1840 = vmatprep.subr.bf16.mxu0 %v1399
        %1841 = vmatpush1.bf16.msra.mxu0 %v1398
        %1842 = vmatprep.subr.bf16.mxu0 %v1403
        %1843 = vmatpush1.bf16.msra.mxu0 %v1402
        %1844 = vmatprep.subr.bf16.mxu0 %v1407
        %1845 = vmatpush1.bf16.msra.mxu0 %v1406
        %1846 = vmatprep.subr.bf16.mxu0 %v1411
        %1847 = vmatpush1.bf16.msra.mxu0 %v1410
        %1848 = vmatprep.subr.bf16.mxu0 %v1415
        %1849 = vmatpush1.bf16.msra.mxu0 %v1414
        %1850 = vmatprep.subr.bf16.mxu0 %v1419
        %1851 = vmatpush1.bf16.msra.mxu0 %v1418
        %1852 = vmatprep.subr.bf16.mxu0 %v1423
        %1853 = vmatpush1.bf16.msra.mxu0 %v1422
        %1854 = vmatprep.subr.bf16.mxu0 %v1427
        %1855 = vmatpush1.bf16.msra.mxu0 %v1426
        %1856 = vmatprep.subr.bf16.mxu0 %v1431
        %1857 = vmatpush1.bf16.msra.mxu0 %v1430
        %1858 = vmatprep.subr.bf16.mxu0 %v1435
        %1859 = vmatpush1.bf16.msra.mxu0 %v1434
        %1860 = vmatprep.subr.bf16.mxu0 %v1439
        %1861 = vmatpush1.bf16.msra.mxu0 %v1438
        %1862 = vmatprep.subr.bf16.mxu0 %v1443
        %1863 = vmatpush1.bf16.msra.mxu0 %v1442
        %1864 = vmatprep.subr.bf16.mxu0 %v1447
        %1865 = vmatpush1.bf16.msra.mxu0 %v1446
        %1866 = vmatprep.mubr.bf16.mxu0 %v462
        %1867 = vmatmul.mubr.bf16.gmra.mrb[0].mxu0 %v461
        %v1868 = vpop.f32.mrb[0].mxu0
        %v1869 = vadd.f32 %v697, %v1868
        %v1870 = vpop.f32.mrb[0].mxu0
        %v1871 = vadd.f32 %v701, %v1870
        %v1872 = vpop.f32.mrb[0].mxu0
        %v1873 = vpop.f32.mrb[0].mxu0
        %1874 = vdwg.mxu0
        %1875 = vmatprep.subr.bf16.mxu0 %v1451
        %1876 = vmatpush1.bf16.msra.mxu0 %v1450
        %1877 = vmatprep.subr.bf16.mxu0 %v1455
        %1878 = vmatpush1.bf16.msra.mxu0 %v1454
        %1879 = vmatprep.subr.bf16.mxu0 %v1459
        %1880 = vmatpush1.bf16.msra.mxu0 %v1458
        %1881 = vmatprep.subr.bf16.mxu0 %v1463
        %1882 = vmatpush1.bf16.msra.mxu0 %v1462
        %1883 = vmatprep.subr.bf16.mxu0 %v1467
        %1884 = vmatpush1.bf16.msra.mxu0 %v1466
        %1885 = vmatprep.subr.bf16.mxu0 %v1471
        %1886 = vmatpush1.bf16.msra.mxu0 %v1470
        %1887 = vmatprep.subr.bf16.mxu0 %v1475
        %1888 = vmatpush1.bf16.msra.mxu0 %v1474
        %1889 = vmatprep.subr.bf16.mxu0 %v1479
        %1890 = vmatpush1.bf16.msra.mxu0 %v1478
        %1891 = vmatprep.subr.bf16.mxu0 %v1483
        %1892 = vmatpush1.bf16.msra.mxu0 %v1482
        %1893 = vmatprep.subr.bf16.mxu0 %v1487
        %1894 = vmatpush1.bf16.msra.mxu0 %v1486
        %1895 = vmatprep.subr.bf16.mxu0 %v1491
        %1896 = vmatpush1.bf16.msra.mxu0 %v1490
        %1897 = vmatprep.subr.bf16.mxu0 %v1495
        %1898 = vmatpush1.bf16.msra.mxu0 %v1494
        %1899 = vmatprep.subr.bf16.mxu0 %v1499
        %1900 = vmatpush1.bf16.msra.mxu0 %v1498
        %1901 = vmatprep.subr.bf16.mxu0 %v1503
        %1902 = vmatpush1.bf16.msra.mxu0 %v1502
        %1903 = vmatprep.subr.bf16.mxu0 %v1507
        %1904 = vmatpush1.bf16.msra.mxu0 %v1506
        %1905 = vmatprep.subr.bf16.mxu0 %v1511
        %1906 = vmatpush1.bf16.msra.mxu0 %v1510
        %1907 = vmatprep.mubr.bf16.mxu0 %v464
        %1908 = vmatmul.mubr.bf16.gmra.mrb[0].mxu0 %v463
        %v1909 = vpop.f32.mrb[0].mxu0
        %v1910 = vadd.f32 %v1869, %v1909
        %v1911 = vpop.f32.mrb[0].mxu0
        %v1912 = vadd.f32 %v1871, %v1911
        %v1913 = vpop.f32.mrb[0].mxu0
        %v1914 = vpop.f32.mrb[0].mxu0
        %1915 = vdwg.mxu0
        %1916 = vmatprep.subr.bf16.mxu0 %v1515
        %1917 = vmatpush1.bf16.msra.mxu0 %v1514
        %1918 = vmatprep.subr.bf16.mxu0 %v1519
        %1919 = vmatpush1.bf16.msra.mxu0 %v1518
        %1920 = vmatprep.subr.bf16.mxu0 %v1523
        %1921 = vmatpush1.bf16.msra.mxu0 %v1522
        %1922 = vmatprep.subr.bf16.mxu0 %v1527
        %1923 = vmatpush1.bf16.msra.mxu0 %v1526
        %1924 = vmatprep.subr.bf16.mxu0 %v1531
        %1925 = vmatpush1.bf16.msra.mxu0 %v1530
        %1926 = vmatprep.subr.bf16.mxu0 %v1535
        %1927 = vmatpush1.bf16.msra.mxu0 %v1534
        %1928 = vmatprep.subr.bf16.mxu0 %v1539
        %1929 = vmatpush1.bf16.msra.mxu0 %v1538
        %1930 = vmatprep.subr.bf16.mxu0 %v1543
        %1931 = vmatpush1.bf16.msra.mxu0 %v1542
        %1932 = vmatprep.subr.bf16.mxu0 %v1547
        %1933 = vmatpush1.bf16.msra.mxu0 %v1546
        %1934 = vmatprep.subr.bf16.mxu0 %v1551
        %1935 = vmatpush1.bf16.msra.mxu0 %v1550
        %1936 = vmatprep.subr.bf16.mxu0 %v1555
        %1937 = vmatpush1.bf16.msra.mxu0 %v1554
        %1938 = vmatprep.subr.bf16.mxu0 %v1559
        %1939 = vmatpush1.bf16.msra.mxu0 %v1558
        %1940 = vmatprep.subr.bf16.mxu0 %v1563
        %1941 = vmatpush1.bf16.msra.mxu0 %v1562
        %1942 = vmatprep.subr.bf16.mxu0 %v1567
        %1943 = vmatpush1.bf16.msra.mxu0 %v1566
        %1944 = vmatprep.subr.bf16.mxu0 %v1571
        %1945 = vmatpush1.bf16.msra.mxu0 %v1570
        %1946 = vmatprep.subr.bf16.mxu0 %v1575
        %1947 = vmatpush1.bf16.msra.mxu0 %v1574
        %1948 = vmatprep.mubr.bf16.mxu0 %v466
        %1949 = vmatmul.mubr.bf16.gmra.mrb[0].mxu0 %v465
        %v1950 = vpop.f32.mrb[0].mxu0
        %v1951 = vadd.f32 %v1910, %v1950
        %v1952 = vpop.f32.mrb[0].mxu0
        %v1953 = vadd.f32 %v1912, %v1952
        %v1954 = vpop.f32.mrb[0].mxu0
        %v1955 = vpop.f32.mrb[0].mxu0
        %1956 = vdwg.mxu0
        %1957 = vmatprep.subr.bf16.mxu0 %v1579
        %1958 = vmatpush1.bf16.msra.mxu0 %v1578
        %1959 = vmatprep.subr.bf16.mxu0 %v1583
        %1960 = vmatpush1.bf16.msra.mxu0 %v1582
        %1961 = vmatprep.subr.bf16.mxu0 %v1587
        %1962 = vmatpush1.bf16.msra.mxu0 %v1586
        %1963 = vmatprep.subr.bf16.mxu0 %v1591
        %1964 = vmatpush1.bf16.msra.mxu0 %v1590
        %1965 = vmatprep.subr.bf16.mxu0 %v1595
        %1966 = vmatpush1.bf16.msra.mxu0 %v1594
        %1967 = vmatprep.subr.bf16.mxu0 %v1599
        %1968 = vmatpush1.bf16.msra.mxu0 %v1598
        %1969 = vmatprep.subr.bf16.mxu0 %v1603
        %1970 = vmatpush1.bf16.msra.mxu0 %v1602
        %1971 = vmatprep.subr.bf16.mxu0 %v1607
        %1972 = vmatpush1.bf16.msra.mxu0 %v1606
        %1973 = vmatprep.subr.bf16.mxu0 0
        %1974 = vmatpush1.bf16.msra.mxu0 0
        %1975 = vmatprep.subr.bf16.mxu0 0
        %1976 = vmatpush1.bf16.msra.mxu0 0
        %1977 = vmatprep.subr.bf16.mxu0 0
        %1978 = vmatpush1.bf16.msra.mxu0 0
        %1979 = vmatprep.subr.bf16.mxu0 0
        %1980 = vmatpush1.bf16.msra.mxu0 0
        %1981 = vmatprep.subr.bf16.mxu0 0
        %1982 = vmatpush1.bf16.msra.mxu0 0
        %1983 = vmatprep.subr.bf16.mxu0 0
        %1984 = vmatpush1.bf16.msra.mxu0 0
        %1985 = vmatprep.subr.bf16.mxu0 0
        %1986 = vmatpush1.bf16.msra.mxu0 0
        %1987 = vmatprep.subr.bf16.mxu0 0
        %1988 = vmatpush1.bf16.msra.mxu0 0
        %1989 = vmatprep.mubr.bf16.mxu0 0
        %1990 = vmatmul.mubr.bf16.gmra.mrb[0].mxu0 %v467
        %v1991 = vpop.f32.mrb[0].mxu0
        %v1992 = vadd.f32 %v1951, %v1991
        %v1993 = vpop.f32.mrb[0].mxu0
        %v1994 = vadd.f32 %v1953, %v1993
        %v1995 = vpop.f32.mrb[0].mxu0
        %v1996 = vpop.f32.mrb[0].mxu0
        %1997 = vdwg.mxu0
        %1998 = vmatprep.subr.bf16.mxu0 %v1389
        %1999 = vmatpush1.bf16.msra.mxu0 %v1388
        %2000 = vmatprep.subr.bf16.mxu0 %v1393
        %2001 = vmatpush1.bf16.msra.mxu0 %v1392
        %2002 = vmatprep.subr.bf16.mxu0 %v1397
        %2003 = vmatpush1.bf16.msra.mxu0 %v1396
        %2004 = vmatprep.subr.bf16.mxu0 %v1401
        %2005 = vmatpush1.bf16.msra.mxu0 %v1400
        %2006 = vmatprep.subr.bf16.mxu0 %v1405
        %2007 = vmatpush1.bf16.msra.mxu0 %v1404
        %2008 = vmatprep.subr.bf16.mxu0 %v1409
        %2009 = vmatpush1.bf16.msra.mxu0 %v1408
        %2010 = vmatprep.subr.bf16.mxu0 %v1413
        %2011 = vmatpush1.bf16.msra.mxu0 %v1412
        %2012 = vmatprep.subr.bf16.mxu0 %v1417
        %2013 = vmatpush1.bf16.msra.mxu0 %v1416
        %2014 = vmatprep.subr.bf16.mxu0 %v1421
        %2015 = vmatpush1.bf16.msra.mxu0 %v1420
        %2016 = vmatprep.subr.bf16.mxu0 %v1425
        %2017 = vmatpush1.bf16.msra.mxu0 %v1424
        %2018 = vmatprep.subr.bf16.mxu0 %v1429
        %2019 = vmatpush1.bf16.msra.mxu0 %v1428
        %2020 = vmatprep.subr.bf16.mxu0 %v1433
        %2021 = vmatpush1.bf16.msra.mxu0 %v1432
        %2022 = vmatprep.subr.bf16.mxu0 %v1437
        %2023 = vmatpush1.bf16.msra.mxu0 %v1436
        %2024 = vmatprep.subr.bf16.mxu0 %v1441
        %2025 = vmatpush1.bf16.msra.mxu0 %v1440
        %2026 = vmatprep.subr.bf16.mxu0 %v1445
        %2027 = vmatpush1.bf16.msra.mxu0 %v1444
        %2028 = vmatprep.subr.bf16.mxu0 %v1449
        %2029 = vmatpush1.bf16.msra.mxu0 %v1448
        %2030 = vmatprep.mubr.bf16.mxu0 %v462
        %2031 = vmatmul.mubr.bf16.gmra.mrb[0].mxu0 %v461
        %v2032 = vpop.f32.mrb[0].mxu0
        %v2033 = vadd.f32 %v705, %v2032
        %v2034 = vpop.f32.mrb[0].mxu0
        %v2035 = vadd.f32 %v709, %v2034
        %v2036 = vpop.f32.mrb[0].mxu0
        %v2037 = vpop.f32.mrb[0].mxu0
        %2038 = vdwg.mxu0
        %2039 = vmatprep.subr.bf16.mxu0 %v1453
        %2040 = vmatpush1.bf16.msra.mxu0 %v1452
        %2041 = vmatprep.subr.bf16.mxu0 %v1457
        %2042 = vmatpush1.bf16.msra.mxu0 %v1456
        %2043 = vmatprep.subr.bf16.mxu0 %v1461
        %2044 = vmatpush1.bf16.msra.mxu0 %v1460
        %2045 = vmatprep.subr.bf16.mxu0 %v1465
        %2046 = vmatpush1.bf16.msra.mxu0 %v1464
        %2047 = vmatprep.subr.bf16.mxu0 %v1469
        %2048 = vmatpush1.bf16.msra.mxu0 %v1468
        %2049 = vmatprep.subr.bf16.mxu0 %v1473
        %2050 = vmatpush1.bf16.msra.mxu0 %v1472
        %2051 = vmatprep.subr.bf16.mxu0 %v1477
        %2052 = vmatpush1.bf16.msra.mxu0 %v1476
        %2053 = vmatprep.subr.bf16.mxu0 %v1481
        %2054 = vmatpush1.bf16.msra.mxu0 %v1480
        %2055 = vmatprep.subr.bf16.mxu0 %v1485
        %2056 = vmatpush1.bf16.msra.mxu0 %v1484
        %2057 = vmatprep.subr.bf16.mxu0 %v1489
        %2058 = vmatpush1.bf16.msra.mxu0 %v1488
        %2059 = vmatprep.subr.bf16.mxu0 %v1493
        %2060 = vmatpush1.bf16.msra.mxu0 %v1492
        %2061 = vmatprep.subr.bf16.mxu0 %v1497
        %2062 = vmatpush1.bf16.msra.mxu0 %v1496
        %2063 = vmatprep.subr.bf16.mxu0 %v1501
        %2064 = vmatpush1.bf16.msra.mxu0 %v1500
        %2065 = vmatprep.subr.bf16.mxu0 %v1505
        %2066 = vmatpush1.bf16.msra.mxu0 %v1504
        %2067 = vmatprep.subr.bf16.mxu0 %v1509
        %2068 = vmatpush1.bf16.msra.mxu0 %v1508
        %2069 = vmatprep.subr.bf16.mxu0 %v1513
        %2070 = vmatpush1.bf16.msra.mxu0 %v1512
        %2071 = vmatprep.mubr.bf16.mxu0 %v464
        %2072 = vmatmul.mubr.bf16.gmra.mrb[0].mxu0 %v463
        %v2073 = vpop.f32.mrb[0].mxu0
        %v2074 = vadd.f32 %v2033, %v2073
        %v2075 = vpop.f32.mrb[0].mxu0
        %v2076 = vadd.f32 %v2035, %v2075
        %v2077 = vpop.f32.mrb[0].mxu0
        %v2078 = vpop.f32.mrb[0].mxu0
        %2079 = vdwg.mxu0
        %2080 = vmatprep.subr.bf16.mxu0 %v1517
        %2081 = vmatpush1.bf16.msra.mxu0 %v1516
        %2082 = vmatprep.subr.bf16.mxu0 %v1521
        %2083 = vmatpush1.bf16.msra.mxu0 %v1520
        %2084 = vmatprep.subr.bf16.mxu0 %v1525
        %2085 = vmatpush1.bf16.msra.mxu0 %v1524
        %2086 = vmatprep.subr.bf16.mxu0 %v1529
        %2087 = vmatpush1.bf16.msra.mxu0 %v1528
        %2088 = vmatprep.subr.bf16.mxu0 %v1533
        %2089 = vmatpush1.bf16.msra.mxu0 %v1532
        %2090 = vmatprep.subr.bf16.mxu0 %v1537
        %2091 = vmatpush1.bf16.msra.mxu0 %v1536
        %2092 = vmatprep.subr.bf16.mxu0 %v1541
        %2093 = vmatpush1.bf16.msra.mxu0 %v1540
        %2094 = vmatprep.subr.bf16.mxu0 %v1545
        %2095 = vmatpush1.bf16.msra.mxu0 %v1544
        %2096 = vmatprep.subr.bf16.mxu0 %v1549
        %2097 = vmatpush1.bf16.msra.mxu0 %v1548
        %2098 = vmatprep.subr.bf16.mxu0 %v1553
        %2099 = vmatpush1.bf16.msra.mxu0 %v1552
        %2100 = vmatprep.subr.bf16.mxu0 %v1557
        %2101 = vmatpush1.bf16.msra.mxu0 %v1556
        %2102 = vmatprep.subr.bf16.mxu0 %v1561
        %2103 = vmatpush1.bf16.msra.mxu0 %v1560
        %2104 = vmatprep.subr.bf16.mxu0 %v1565
        %2105 = vmatpush1.bf16.msra.mxu0 %v1564
        %2106 = vmatprep.subr.bf16.mxu0 %v1569
        %2107 = vmatpush1.bf16.msra.mxu0 %v1568
        %2108 = vmatprep.subr.bf16.mxu0 %v1573
        %2109 = vmatpush1.bf16.msra.mxu0 %v1572
        %2110 = vmatprep.subr.bf16.mxu0 %v1577
        %2111 = vmatpush1.bf16.msra.mxu0 %v1576
        %2112 = vmatprep.mubr.bf16.mxu0 %v466
        %2113 = vmatmul.mubr.bf16.gmra.mrb[0].mxu0 %v465
        %v2114 = vpop.f32.mrb[0].mxu0
        %v2115 = vadd.f32 %v2074, %v2114
        %v2116 = vpop.f32.mrb[0].mxu0
        %v2117 = vadd.f32 %v2076, %v2116
        %v2118 = vpop.f32.mrb[0].mxu0
        %v2119 = vpop.f32.mrb[0].mxu0
        %2120 = vdwg.mxu0
        %2121 = vmatprep.subr.bf16.mxu0 %v1581
        %2122 = vmatpush1.bf16.msra.mxu0 %v1580
        %2123 = vmatprep.subr.bf16.mxu0 %v1585
        %2124 = vmatpush1.bf16.msra.mxu0 %v1584
        %2125 = vmatprep.subr.bf16.mxu0 %v1589
        %2126 = vmatpush1.bf16.msra.mxu0 %v1588
        %2127 = vmatprep.subr.bf16.mxu0 %v1593
        %2128 = vmatpush1.bf16.msra.mxu0 %v1592
        %2129 = vmatprep.subr.bf16.mxu0 %v1597
        %2130 = vmatpush1.bf16.msra.mxu0 %v1596
        %2131 = vmatprep.subr.bf16.mxu0 %v1601
        %2132 = vmatpush1.bf16.msra.mxu0 %v1600
        %2133 = vmatprep.subr.bf16.mxu0 %v1605
        %2134 = vmatpush1.bf16.msra.mxu0 %v1604
        %2135 = vmatprep.subr.bf16.mxu0 %v1609
        %2136 = vmatpush1.bf16.msra.mxu0 %v1608
        %2137 = vmatprep.subr.bf16.mxu0 0
        %2138 = vmatpush1.bf16.msra.mxu0 0
        %2139 = vmatprep.subr.bf16.mxu0 0
        %2140 = vmatpush1.bf16.msra.mxu0 0
        %2141 = vmatprep.subr.bf16.mxu0 0
        %2142 = vmatpush1.bf16.msra.mxu0 0
        %2143 = vmatprep.subr.bf16.mxu0 0
        %2144 = vmatpush1.bf16.msra.mxu0 0
        %2145 = vmatprep.subr.bf16.mxu0 0
        %2146 = vmatpush1.bf16.msra.mxu0 0
        %2147 = vmatprep.subr.bf16.mxu0 0
        %2148 = vmatpush1.bf16.msra.mxu0 0
        %2149 = vmatprep.subr.bf16.mxu0 0
        %2150 = vmatpush1.bf16.msra.mxu0 0
        %2151 = vmatprep.subr.bf16.mxu0 0
        %2152 = vmatpush1.bf16.msra.mxu0 0
        %2153 = vmatprep.mubr.bf16.mxu0 0
        %2154 = vmatmul.mubr.bf16.gmra.mrb[0].mxu0 %v467
        %v2155 = vpop.f32.mrb[0].mxu0
        %v2156 = vadd.f32 %v2115, %v2155
        %v2157 = vpop.f32.mrb[0].mxu0
        %v2158 = vadd.f32 %v2117, %v2157
        %v2159 = vpop.f32.mrb[0].mxu0
        %v2160 = vpop.f32.mrb[0].mxu0
        %2161 = vdwg.mxu0
        %v2162 = vmax.f32 %v1992, 0.0
        %v2163 = vmax.f32 %v1994, 0.0
        %v2164 = vmax.f32 %v2156, 0.0
        %v2165 = vmax.f32 %v2158, 0.0
        %v2166 = vpack.c.bf16 %v2162, %v2162
        %v2167 = vpack.c.bf16 %v2163, %v2163
        %v2168 = vpack.c.bf16 %v2164, %v2164
        %v2169 = vpack.c.bf16 %v2165, %v2165
        %v2170 = vld [vmem:[#allocation5] sm:$0xff]
        %v2171 = vld [vmem:[#allocation5 + $0x8] sm:$0xff]
        %v2172 = vld [vmem:[#allocation5 + $0x10] sm:$0xff]
        %v2173 = vld [vmem:[#allocation5 + $0x18] sm:$0xff]
        %v2174 = vld [vmem:[#allocation5 + $0x20] sm:$0xff]
        %v2175 = vld [vmem:[#allocation5 + $0x28] sm:$0xff]
        %v2176 = vld [vmem:[#allocation5 + $0x30] sm:$0xff]
        %v2177 = vld [vmem:[#allocation5 + $0x38] sm:$0xff]
        %v2178 = vld [vmem:[#allocation5 + $0x40] sm:$0xff]
        %v2179 = vld [vmem:[#allocation5 + $0x48] sm:$0xff]
        %v2180 = vld [vmem:[#allocation5 + $0x50] sm:$0xff]
        %v2181 = vld [vmem:[#allocation5 + $0x58] sm:$0xff]
        %v2182 = vld [vmem:[#allocation5 + $0x60] sm:$0xff]
        %v2183 = vld [vmem:[#allocation5 + $0x68] sm:$0xff]
        %v2184 = vld [vmem:[#allocation5 + $0x70] sm:$0xff]
        %v2185 = vld [vmem:[#allocation5 + $0x78] sm:$0xff]
        %v2186 = vld [vmem:[#allocation5 + $0x80] sm:$0xff]
        %v2187 = vld [vmem:[#allocation5 + $0x88] sm:$0xff]
        %v2188 = vld [vmem:[#allocation5 + $0x90] sm:$0xff]
        %v2189 = vld [vmem:[#allocation5 + $0x98] sm:$0xff]
        %v2190 = vld [vmem:[#allocation5 + $0xa0] sm:$0xff]
        %v2191 = vld [vmem:[#allocation5 + $0xa8] sm:$0xff]
        %v2192 = vld [vmem:[#allocation5 + $0xb0] sm:$0xff]
        %v2193 = vld [vmem:[#allocation5 + $0xb8] sm:$0xff]
        %v2194 = vld [vmem:[#allocation5 + $0xc0] sm:$0xff]
        %v2195 = vld [vmem:[#allocation5 + $0xc8] sm:$0xff]
        %v2196 = vld [vmem:[#allocation5 + $0xd0] sm:$0xff]
        %v2197 = vld [vmem:[#allocation5 + $0xd8] sm:$0xff]
        %v2198 = vld [vmem:[#allocation5 + $0xe0] sm:$0xff]
        %v2199 = vld [vmem:[#allocation5 + $0xe8] sm:$0xff]
        %v2200 = vld [vmem:[#allocation5 + $0xf0] sm:$0xff]
        %v2201 = vld [vmem:[#allocation5 + $0xf8] sm:$0xff]
        %v2202 = vld [vmem:[#allocation5 + $0x100] sm:$0xff]
        %v2203 = vld [vmem:[#allocation5 + $0x108] sm:$0xff]
        %v2204 = vld [vmem:[#allocation5 + $0x110] sm:$0xff]
        %v2205 = vld [vmem:[#allocation5 + $0x118] sm:$0xff]
        %v2206 = vld [vmem:[#allocation5 + $0x120] sm:$0xff]
        %v2207 = vld [vmem:[#allocation5 + $0x128] sm:$0xff]
        %v2208 = vld [vmem:[#allocation5 + $0x130] sm:$0xff]
        %v2209 = vld [vmem:[#allocation5 + $0x138] sm:$0xff]
        %v2210 = vld [vmem:[#allocation5 + $0x140] sm:$0xff]
        %v2211 = vld [vmem:[#allocation5 + $0x148] sm:$0xff]
        %v2212 = vld [vmem:[#allocation5 + $0x150] sm:$0xff]
        %v2213 = vld [vmem:[#allocation5 + $0x158] sm:$0xff]
        %v2214 = vld [vmem:[#allocation5 + $0x160] sm:$0xff]
        %v2215 = vld [vmem:[#allocation5 + $0x168] sm:$0xff]
        %v2216 = vld [vmem:[#allocation5 + $0x170] sm:$0xff]
        %v2217 = vld [vmem:[#allocation5 + $0x178] sm:$0xff]
        %v2218 = vld [vmem:[#allocation5 + $0x180] sm:$0xff]
        %v2219 = vld [vmem:[#allocation5 + $0x188] sm:$0xff]
        %v2220 = vld [vmem:[#allocation5 + $0x190] sm:$0xff]
        %v2221 = vld [vmem:[#allocation5 + $0x198] sm:$0xff]
        %v2222 = vld [vmem:[#allocation5 + $0x1a0] sm:$0xff]
        %v2223 = vld [vmem:[#allocation5 + $0x1a8] sm:$0xff]
        %v2224 = vld [vmem:[#allocation5 + $0x1b0] sm:$0xff]
        %v2225 = vld [vmem:[#allocation5 + $0x1b8] sm:$0xff]
        %v2226 = vld [vmem:[#allocation5 + $0x1c0] sm:$0xff]
        %v2227 = vld [vmem:[#allocation5 + $0x1c8] sm:$0xff]
        %v2228 = vld [vmem:[#allocation5 + $0x1d0] sm:$0xff]
        %v2229 = vld [vmem:[#allocation5 + $0x1d8] sm:$0xff]
        %v2230 = vld [vmem:[#allocation5 + $0x1e0] sm:$0xff]
        %v2231 = vld [vmem:[#allocation5 + $0x1e8] sm:$0xff]
        %v2232 = vld [vmem:[#allocation5 + $0x1f0] sm:$0xff]
        %v2233 = vld [vmem:[#allocation5 + $0x1f8] sm:$0xff]
        %v2234 = vld [vmem:[%s4] sm:$0x3]
        %v2236 = vlaneseq
        %v2237 = vshrl.u32 %v2236, 7
        %v2238 = vsub.s32 0, %v2237
        %v2239 = vrot.slane %v2234, %v2238
        %v2240 = vlaneseq
        %v2241 = vshrl.u32 %v2240, 7
        %v2242 = vsub.s32 1, %v2241
        %v2243 = vrot.slane %v2234, %v2242
        %v2310 = vunpack.c.l.b16 %v2170
        %v2311 = vunpack.c.h.b16 %v2170
        %v2312 = vunpack.c.l.b16 %v2171
        %v2313 = vunpack.c.h.b16 %v2171
        %v2314 = vunpack.c.l.b16 %v2172
        %v2315 = vunpack.c.h.b16 %v2172
        %v2316 = vunpack.c.l.b16 %v2173
        %v2317 = vunpack.c.h.b16 %v2173
        %v2318 = vunpack.c.l.b16 %v2174
        %v2319 = vunpack.c.h.b16 %v2174
        %v2320 = vunpack.c.l.b16 %v2175
        %v2321 = vunpack.c.h.b16 %v2175
        %v2322 = vunpack.c.l.b16 %v2176
        %v2323 = vunpack.c.h.b16 %v2176
        %v2324 = vunpack.c.l.b16 %v2177
        %v2325 = vunpack.c.h.b16 %v2177
        %v2326 = vunpack.c.l.b16 %v2178
        %v2327 = vunpack.c.h.b16 %v2178
        %v2328 = vunpack.c.l.b16 %v2179
        %v2329 = vunpack.c.h.b16 %v2179
        %v2330 = vunpack.c.l.b16 %v2180
        %v2331 = vunpack.c.h.b16 %v2180
        %v2332 = vunpack.c.l.b16 %v2181
        %v2333 = vunpack.c.h.b16 %v2181
        %v2334 = vunpack.c.l.b16 %v2182
        %v2335 = vunpack.c.h.b16 %v2182
        %v2336 = vunpack.c.l.b16 %v2183
        %v2337 = vunpack.c.h.b16 %v2183
        %v2338 = vunpack.c.l.b16 %v2184
        %v2339 = vunpack.c.h.b16 %v2184
        %v2340 = vunpack.c.l.b16 %v2185
        %v2341 = vunpack.c.h.b16 %v2185
        %v2342 = vunpack.c.l.b16 %v2186
        %v2343 = vunpack.c.h.b16 %v2186
        %v2344 = vunpack.c.l.b16 %v2187
        %v2345 = vunpack.c.h.b16 %v2187
        %v2346 = vunpack.c.l.b16 %v2188
        %v2347 = vunpack.c.h.b16 %v2188
        %v2348 = vunpack.c.l.b16 %v2189
        %v2349 = vunpack.c.h.b16 %v2189
        %v2350 = vunpack.c.l.b16 %v2190
        %v2351 = vunpack.c.h.b16 %v2190
        %v2352 = vunpack.c.l.b16 %v2191
        %v2353 = vunpack.c.h.b16 %v2191
        %v2354 = vunpack.c.l.b16 %v2192
        %v2355 = vunpack.c.h.b16 %v2192
        %v2356 = vunpack.c.l.b16 %v2193
        %v2357 = vunpack.c.h.b16 %v2193
        %v2358 = vunpack.c.l.b16 %v2194
        %v2359 = vunpack.c.h.b16 %v2194
        %v2360 = vunpack.c.l.b16 %v2195
        %v2361 = vunpack.c.h.b16 %v2195
        %v2362 = vunpack.c.l.b16 %v2196
        %v2363 = vunpack.c.h.b16 %v2196
        %v2364 = vunpack.c.l.b16 %v2197
        %v2365 = vunpack.c.h.b16 %v2197
        %v2366 = vunpack.c.l.b16 %v2198
        %v2367 = vunpack.c.h.b16 %v2198
        %v2368 = vunpack.c.l.b16 %v2199
        %v2369 = vunpack.c.h.b16 %v2199
        %v2370 = vunpack.c.l.b16 %v2200
        %v2371 = vunpack.c.h.b16 %v2200
        %v2372 = vunpack.c.l.b16 %v2201
        %v2373 = vunpack.c.h.b16 %v2201
        %v2374 = vunpack.c.l.b16 %v2202
        %v2375 = vunpack.c.h.b16 %v2202
        %v2376 = vunpack.c.l.b16 %v2203
        %v2377 = vunpack.c.h.b16 %v2203
        %v2378 = vunpack.c.l.b16 %v2204
        %v2379 = vunpack.c.h.b16 %v2204
        %v2380 = vunpack.c.l.b16 %v2205
        %v2381 = vunpack.c.h.b16 %v2205
        %v2382 = vunpack.c.l.b16 %v2206
        %v2383 = vunpack.c.h.b16 %v2206
        %v2384 = vunpack.c.l.b16 %v2207
        %v2385 = vunpack.c.h.b16 %v2207
        %v2386 = vunpack.c.l.b16 %v2208
        %v2387 = vunpack.c.h.b16 %v2208
        %v2388 = vunpack.c.l.b16 %v2209
        %v2389 = vunpack.c.h.b16 %v2209
        %v2390 = vunpack.c.l.b16 %v2210
        %v2391 = vunpack.c.h.b16 %v2210
        %v2392 = vunpack.c.l.b16 %v2211
        %v2393 = vunpack.c.h.b16 %v2211
        %v2394 = vunpack.c.l.b16 %v2212
        %v2395 = vunpack.c.h.b16 %v2212
        %v2396 = vunpack.c.l.b16 %v2213
        %v2397 = vunpack.c.h.b16 %v2213
        %v2398 = vunpack.c.l.b16 %v2214
        %v2399 = vunpack.c.h.b16 %v2214
        %v2400 = vunpack.c.l.b16 %v2215
        %v2401 = vunpack.c.h.b16 %v2215
        %v2402 = vunpack.c.l.b16 %v2216
        %v2403 = vunpack.c.h.b16 %v2216
        %v2404 = vunpack.c.l.b16 %v2217
        %v2405 = vunpack.c.h.b16 %v2217
        %v2406 = vunpack.c.l.b16 %v2218
        %v2407 = vunpack.c.h.b16 %v2218
        %v2408 = vunpack.c.l.b16 %v2219
        %v2409 = vunpack.c.h.b16 %v2219
        %v2410 = vunpack.c.l.b16 %v2220
        %v2411 = vunpack.c.h.b16 %v2220
        %v2412 = vunpack.c.l.b16 %v2221
        %v2413 = vunpack.c.h.b16 %v2221
        %v2414 = vunpack.c.l.b16 %v2222
        %v2415 = vunpack.c.h.b16 %v2222
        %v2416 = vunpack.c.l.b16 %v2223
        %v2417 = vunpack.c.h.b16 %v2223
        %v2418 = vunpack.c.l.b16 %v2224
        %v2419 = vunpack.c.h.b16 %v2224
        %v2420 = vunpack.c.l.b16 %v2225
        %v2421 = vunpack.c.h.b16 %v2225
        %v2422 = vunpack.c.l.b16 %v2226
        %v2423 = vunpack.c.h.b16 %v2226
        %v2424 = vunpack.c.l.b16 %v2227
        %v2425 = vunpack.c.h.b16 %v2227
        %v2426 = vunpack.c.l.b16 %v2228
        %v2427 = vunpack.c.h.b16 %v2228
        %v2428 = vunpack.c.l.b16 %v2229
        %v2429 = vunpack.c.h.b16 %v2229
        %v2430 = vunpack.c.l.b16 %v2230
        %v2431 = vunpack.c.h.b16 %v2230
        %v2432 = vunpack.c.l.b16 %v2231
        %v2433 = vunpack.c.h.b16 %v2231
        %v2434 = vunpack.c.l.b16 %v2232
        %v2435 = vunpack.c.h.b16 %v2232
        %v2436 = vunpack.c.l.b16 %v2233
        %v2437 = vunpack.c.h.b16 %v2233
        %v2438 = vpack.c.b16 %v2312, %v2310
        %v2439 = vpack.c.b16 %v2313, %v2311
        %v2440 = vpack.c.b16 %v2316, %v2314
        %v2441 = vpack.c.b16 %v2317, %v2315
        %v2442 = vpack.c.b16 %v2320, %v2318
        %v2443 = vpack.c.b16 %v2321, %v2319
        %v2444 = vpack.c.b16 %v2324, %v2322
        %v2445 = vpack.c.b16 %v2325, %v2323
        %v2446 = vpack.c.b16 %v2328, %v2326
        %v2447 = vpack.c.b16 %v2329, %v2327
        %v2448 = vpack.c.b16 %v2332, %v2330
        %v2449 = vpack.c.b16 %v2333, %v2331
        %v2450 = vpack.c.b16 %v2336, %v2334
        %v2451 = vpack.c.b16 %v2337, %v2335
        %v2452 = vpack.c.b16 %v2340, %v2338
        %v2453 = vpack.c.b16 %v2341, %v2339
        %v2454 = vpack.c.b16 %v2344, %v2342
        %v2455 = vpack.c.b16 %v2345, %v2343
        %v2456 = vpack.c.b16 %v2348, %v2346
        %v2457 = vpack.c.b16 %v2349, %v2347
        %v2458 = vpack.c.b16 %v2352, %v2350
        %v2459 = vpack.c.b16 %v2353, %v2351
        %v2460 = vpack.c.b16 %v2356, %v2354
        %v2461 = vpack.c.b16 %v2357, %v2355
        %v2462 = vpack.c.b16 %v2360, %v2358
        %v2463 = vpack.c.b16 %v2361, %v2359
        %v2464 = vpack.c.b16 %v2364, %v2362
        %v2465 = vpack.c.b16 %v2365, %v2363
        %v2466 = vpack.c.b16 %v2368, %v2366
        %v2467 = vpack.c.b16 %v2369, %v2367
        %v2468 = vpack.c.b16 %v2372, %v2370
        %v2469 = vpack.c.b16 %v2373, %v2371
        %v2470 = vpack.c.b16 %v2376, %v2374
        %v2471 = vpack.c.b16 %v2377, %v2375
        %v2472 = vpack.c.b16 %v2380, %v2378
        %v2473 = vpack.c.b16 %v2381, %v2379
        %v2474 = vpack.c.b16 %v2384, %v2382
        %v2475 = vpack.c.b16 %v2385, %v2383
        %v2476 = vpack.c.b16 %v2388, %v2386
        %v2477 = vpack.c.b16 %v2389, %v2387
        %v2478 = vpack.c.b16 %v2392, %v2390
        %v2479 = vpack.c.b16 %v2393, %v2391
        %v2480 = vpack.c.b16 %v2396, %v2394
        %v2481 = vpack.c.b16 %v2397, %v2395
        %v2482 = vpack.c.b16 %v2400, %v2398
        %v2483 = vpack.c.b16 %v2401, %v2399
        %v2484 = vpack.c.b16 %v2404, %v2402
        %v2485 = vpack.c.b16 %v2405, %v2403
        %v2486 = vpack.c.b16 %v2408, %v2406
        %v2487 = vpack.c.b16 %v2409, %v2407
        %v2488 = vpack.c.b16 %v2412, %v2410
        %v2489 = vpack.c.b16 %v2413, %v2411
        %v2490 = vpack.c.b16 %v2416, %v2414
        %v2491 = vpack.c.b16 %v2417, %v2415
        %v2492 = vpack.c.b16 %v2420, %v2418
        %v2493 = vpack.c.b16 %v2421, %v2419
        %v2494 = vpack.c.b16 %v2424, %v2422
        %v2495 = vpack.c.b16 %v2425, %v2423
        %v2496 = vpack.c.b16 %v2428, %v2426
        %v2497 = vpack.c.b16 %v2429, %v2427
        %v2498 = vpack.c.b16 %v2432, %v2430
        %v2499 = vpack.c.b16 %v2433, %v2431
        %v2500 = vpack.c.b16 %v2436, %v2434
        %v2501 = vpack.c.b16 %v2437, %v2435
        %2566 = vmatprep.subr.bf16.mxu0 %v2439
        %2567 = vmatpush1.bf16.msra.mxu0 %v2438
        %2568 = vmatprep.subr.bf16.mxu0 %v2441
        %2569 = vmatpush1.bf16.msra.mxu0 %v2440
        %2570 = vmatprep.subr.bf16.mxu0 %v2443
        %2571 = vmatpush1.bf16.msra.mxu0 %v2442
        %2572 = vmatprep.subr.bf16.mxu0 %v2445
        %2573 = vmatpush1.bf16.msra.mxu0 %v2444
        %2574 = vmatprep.subr.bf16.mxu0 %v2447
        %2575 = vmatpush1.bf16.msra.mxu0 %v2446
        %2576 = vmatprep.subr.bf16.mxu0 %v2449
        %2577 = vmatpush1.bf16.msra.mxu0 %v2448
        %2578 = vmatprep.subr.bf16.mxu0 %v2451
        %2579 = vmatpush1.bf16.msra.mxu0 %v2450
        %2580 = vmatprep.subr.bf16.mxu0 %v2453
        %2581 = vmatpush1.bf16.msra.mxu0 %v2452
        %2582 = vmatprep.subr.bf16.mxu0 %v2455
        %2583 = vmatpush1.bf16.msra.mxu0 %v2454
        %2584 = vmatprep.subr.bf16.mxu0 %v2457
        %2585 = vmatpush1.bf16.msra.mxu0 %v2456
        %2586 = vmatprep.subr.bf16.mxu0 %v2459
        %2587 = vmatpush1.bf16.msra.mxu0 %v2458
        %2588 = vmatprep.subr.bf16.mxu0 %v2461
        %2589 = vmatpush1.bf16.msra.mxu0 %v2460
        %2590 = vmatprep.subr.bf16.mxu0 %v2463
        %2591 = vmatpush1.bf16.msra.mxu0 %v2462
        %2592 = vmatprep.subr.bf16.mxu0 %v2465
        %2593 = vmatpush1.bf16.msra.mxu0 %v2464
        %2594 = vmatprep.subr.bf16.mxu0 %v2467
        %2595 = vmatpush1.bf16.msra.mxu0 %v2466
        %2596 = vmatprep.subr.bf16.mxu0 %v2469
        %2597 = vmatpush1.bf16.msra.mxu0 %v2468
        %2598 = vmatprep.mubr.bf16.mxu0 %v2167
        %2599 = vmatmul.mubr.bf16.gmra.mrb[0].mxu0 %v2166
        %v2600 = vpop.f32.mrb[0].mxu0
        %v2601 = vadd.f32 %v2239, %v2600
        %v2602 = vpop.f32.mrb[0].mxu0
        %v2603 = vadd.f32 %v2243, %v2602
        %v2604 = vpop.f32.mrb[0].mxu0
        %v2605 = vpop.f32.mrb[0].mxu0
        %2606 = vdwg.mxu0
        %2607 = vmatprep.subr.bf16.mxu0 %v2471
        %2608 = vmatpush1.bf16.msra.mxu0 %v2470
        %2609 = vmatprep.subr.bf16.mxu0 %v2473
        %2610 = vmatpush1.bf16.msra.mxu0 %v2472
        %2611 = vmatprep.subr.bf16.mxu0 %v2475
        %2612 = vmatpush1.bf16.msra.mxu0 %v2474
        %2613 = vmatprep.subr.bf16.mxu0 %v2477
        %2614 = vmatpush1.bf16.msra.mxu0 %v2476
        %2615 = vmatprep.subr.bf16.mxu0 %v2479
        %2616 = vmatpush1.bf16.msra.mxu0 %v2478
        %2617 = vmatprep.subr.bf16.mxu0 %v2481
        %2618 = vmatpush1.bf16.msra.mxu0 %v2480
        %2619 = vmatprep.subr.bf16.mxu0 %v2483
        %2620 = vmatpush1.bf16.msra.mxu0 %v2482
        %2621 = vmatprep.subr.bf16.mxu0 %v2485
        %2622 = vmatpush1.bf16.msra.mxu0 %v2484
        %2623 = vmatprep.subr.bf16.mxu0 %v2487
        %2624 = vmatpush1.bf16.msra.mxu0 %v2486
        %2625 = vmatprep.subr.bf16.mxu0 %v2489
        %2626 = vmatpush1.bf16.msra.mxu0 %v2488
        %2627 = vmatprep.subr.bf16.mxu0 %v2491
        %2628 = vmatpush1.bf16.msra.mxu0 %v2490
        %2629 = vmatprep.subr.bf16.mxu0 %v2493
        %2630 = vmatpush1.bf16.msra.mxu0 %v2492
        %2631 = vmatprep.subr.bf16.mxu0 %v2495
        %2632 = vmatpush1.bf16.msra.mxu0 %v2494
        %2633 = vmatprep.subr.bf16.mxu0 %v2497
        %2634 = vmatpush1.bf16.msra.mxu0 %v2496
        %2635 = vmatprep.subr.bf16.mxu0 %v2499
        %2636 = vmatpush1.bf16.msra.mxu0 %v2498
        %2637 = vmatprep.subr.bf16.mxu0 %v2501
        %2638 = vmatpush1.bf16.msra.mxu0 %v2500
        %2639 = vmatprep.mubr.bf16.mxu0 %v2169
        %2640 = vmatmul.mubr.bf16.gmra.mrb[0].mxu0 %v2168
        %v2641 = vpop.f32.mrb[0].mxu0
        %v2642 = vadd.f32 %v2601, %v2641
        %v2643 = vpop.f32.mrb[0].mxu0
        %v2644 = vadd.f32 %v2603, %v2643
        %v2645 = vpop.f32.mrb[0].mxu0
        %v2646 = vpop.f32.mrb[0].mxu0
        %2647 = vdwg.mxu0
        %v2648 = vmax.f32 %v2642, 0.0
        %v2649 = vmax.f32 %v2644, 0.0
        %v2650 = vpack.c.bf16 %v2648, %v2648
        %v2651 = vpack.c.bf16 %v2649, %v2649
        %v2652 = vld [vmem:[%s5] sm:$0xf]
        %v2653 = vld [vmem:[%s5 + $0x4] sm:$0xf]
        %v2654 = vld [vmem:[%s5 + $0x8] sm:$0xf]
        %v2655 = vld [vmem:[%s5 + $0xc] sm:$0xf]
        %v2656 = vld [vmem:[%s5 + $0x10] sm:$0xf]
        %v2657 = vld [vmem:[%s5 + $0x14] sm:$0xf]
        %v2658 = vld [vmem:[%s5 + $0x18] sm:$0xf]
        %v2659 = vld [vmem:[%s5 + $0x1c] sm:$0xf]
        %v2660 = vld [vmem:[%s5 + $0x20] sm:$0xf]
        %v2661 = vld [vmem:[%s5 + $0x24] sm:$0xf]
        %v2662 = vld [vmem:[%s5 + $0x28] sm:$0xf]
        %v2663 = vld [vmem:[%s5 + $0x2c] sm:$0xf]
        %v2664 = vld [vmem:[%s5 + $0x30] sm:$0xf]
        %v2665 = vld [vmem:[%s5 + $0x34] sm:$0xf]
        %v2666 = vld [vmem:[%s5 + $0x38] sm:$0xf]
        %v2667 = vld [vmem:[%s5 + $0x3c] sm:$0xf]
        %v2668 = vld [vmem:[%s5 + $0x40] sm:$0xf]
        %v2669 = vld [vmem:[%s5 + $0x44] sm:$0xf]
        %v2670 = vld [vmem:[%s5 + $0x48] sm:$0xf]
        %v2671 = vld [vmem:[%s5 + $0x4c] sm:$0xf]
        %v2672 = vld [vmem:[%s5 + $0x50] sm:$0xf]
        %v2673 = vld [vmem:[%s5 + $0x54] sm:$0xf]
        %v2674 = vld [vmem:[%s5 + $0x58] sm:$0xf]
        %v2675 = vld [vmem:[%s5 + $0x5c] sm:$0xf]
        %v2676 = vld [vmem:[%s5 + $0x60] sm:$0xf]
        %v2677 = vld [vmem:[%s5 + $0x64] sm:$0xf]
        %v2678 = vld [vmem:[%s5 + $0x68] sm:$0xf]
        %v2679 = vld [vmem:[%s5 + $0x6c] sm:$0xf]
        %v2680 = vld [vmem:[%s5 + $0x70] sm:$0xf]
        %v2681 = vld [vmem:[%s5 + $0x74] sm:$0xf]
        %v2682 = vld [vmem:[%s5 + $0x78] sm:$0xf]
        %v2683 = vld [vmem:[%s5 + $0x7c] sm:$0xf]
        %v2684 = vld [vmem:[%s6] sm:$0x1]
        %v2686 = vlaneseq
        %v2687 = vshrl.u32 %v2686, 7
        %v2688 = vsub.s32 0, %v2687
        %v2689 = vrot.slane %v2684, %v2688
        %v2723 = vunpack.c.l.b16 %v2652
        %v2724 = vunpack.c.l.b16 %v2653
        %v2725 = vunpack.c.l.b16 %v2654
        %v2726 = vunpack.c.l.b16 %v2655
        %v2727 = vunpack.c.l.b16 %v2656
        %v2728 = vunpack.c.l.b16 %v2657
        %v2729 = vunpack.c.l.b16 %v2658
        %v2730 = vunpack.c.l.b16 %v2659
        %v2731 = vunpack.c.l.b16 %v2660
        %v2732 = vunpack.c.l.b16 %v2661
        %v2733 = vunpack.c.l.b16 %v2662
        %v2734 = vunpack.c.l.b16 %v2663
        %v2735 = vunpack.c.l.b16 %v2664
        %v2736 = vunpack.c.l.b16 %v2665
        %v2737 = vunpack.c.l.b16 %v2666
        %v2738 = vunpack.c.l.b16 %v2667
        %v2739 = vunpack.c.l.b16 %v2668
        %v2740 = vunpack.c.l.b16 %v2669
        %v2741 = vunpack.c.l.b16 %v2670
        %v2742 = vunpack.c.l.b16 %v2671
        %v2743 = vunpack.c.l.b16 %v2672
        %v2744 = vunpack.c.l.b16 %v2673
        %v2745 = vunpack.c.l.b16 %v2674
        %v2746 = vunpack.c.l.b16 %v2675
        %v2747 = vunpack.c.l.b16 %v2676
        %v2748 = vunpack.c.l.b16 %v2677
        %v2749 = vunpack.c.l.b16 %v2678
        %v2750 = vunpack.c.l.b16 %v2679
        %v2751 = vunpack.c.l.b16 %v2680
        %v2752 = vunpack.c.l.b16 %v2681
        %v2753 = vunpack.c.l.b16 %v2682
        %v2754 = vunpack.c.l.b16 %v2683
        %v2755 = vpack.c.b16 %v2724, %v2723
        %v2756 = vpack.c.b16 %v2726, %v2725
        %v2757 = vpack.c.b16 %v2728, %v2727
        %v2758 = vpack.c.b16 %v2730, %v2729
        %v2759 = vpack.c.b16 %v2732, %v2731
        %v2760 = vpack.c.b16 %v2734, %v2733
        %v2761 = vpack.c.b16 %v2736, %v2735
        %v2762 = vpack.c.b16 %v2738, %v2737
        %v2763 = vpack.c.b16 %v2740, %v2739
        %v2764 = vpack.c.b16 %v2742, %v2741
        %v2765 = vpack.c.b16 %v2744, %v2743
        %v2766 = vpack.c.b16 %v2746, %v2745
        %v2767 = vpack.c.b16 %v2748, %v2747
        %v2768 = vpack.c.b16 %v2750, %v2749
        %v2769 = vpack.c.b16 %v2752, %v2751
        %v2770 = vpack.c.b16 %v2754, %v2753
        %2787 = vmatprep.subr.bf16.mxu0 0
        %2788 = vmatpush1.bf16.msra.mxu0 %v2755
        %2789 = vmatprep.subr.bf16.mxu0 0
        %2790 = vmatpush1.bf16.msra.mxu0 %v2756
        %2791 = vmatprep.subr.bf16.mxu0 0
        %2792 = vmatpush1.bf16.msra.mxu0 %v2757
        %2793 = vmatprep.subr.bf16.mxu0 0
        %2794 = vmatpush1.bf16.msra.mxu0 %v2758
        %2795 = vmatprep.subr.bf16.mxu0 0
        %2796 = vmatpush1.bf16.msra.mxu0 %v2759
        %2797 = vmatprep.subr.bf16.mxu0 0
        %2798 = vmatpush1.bf16.msra.mxu0 %v2760
        %2799 = vmatprep.subr.bf16.mxu0 0
        %2800 = vmatpush1.bf16.msra.mxu0 %v2761
        %2801 = vmatprep.subr.bf16.mxu0 0
        %2802 = vmatpush1.bf16.msra.mxu0 %v2762
        %2803 = vmatprep.subr.bf16.mxu0 0
        %2804 = vmatpush1.bf16.msra.mxu0 %v2763
        %2805 = vmatprep.subr.bf16.mxu0 0
        %2806 = vmatpush1.bf16.msra.mxu0 %v2764
        %2807 = vmatprep.subr.bf16.mxu0 0
        %2808 = vmatpush1.bf16.msra.mxu0 %v2765
        %2809 = vmatprep.subr.bf16.mxu0 0
        %2810 = vmatpush1.bf16.msra.mxu0 %v2766
        %2811 = vmatprep.subr.bf16.mxu0 0
        %2812 = vmatpush1.bf16.msra.mxu0 %v2767
        %2813 = vmatprep.subr.bf16.mxu0 0
        %2814 = vmatpush1.bf16.msra.mxu0 %v2768
        %2815 = vmatprep.subr.bf16.mxu0 0
        %2816 = vmatpush1.bf16.msra.mxu0 %v2769
        %2817 = vmatprep.subr.bf16.mxu0 0
        %2818 = vmatpush1.bf16.msra.mxu0 %v2770
        %2819 = vmatprep.mubr.bf16.mxu0 %v2651
        %2820 = vmatmul.mubr.bf16.gmra.mrb[0].mxu0 %v2650
        %v2821 = vpop.f32.mrb[0].mxu0
        %v2822 = vadd.f32 %v2689, %v2821
        %v2823 = vpop.f32.mrb[0].mxu0
        %v2824 = vpop.f32.mrb[0].mxu0
        %v2825 = vpop.f32.mrb[0].mxu0
        %2826 = vdwg.mxu0
        %v2827 = vmax.f32 %v2822, 0.0
        %v2828 = vpack.c.bf16 %v2827, %v2827
        %v2829 = vld [vmem:[%s7] sm:$0xf]
        %v2830 = vld [vmem:[%s7 + $0x4] sm:$0xf]
        %v2831 = vld [vmem:[%s7 + $0x8] sm:$0xf]
        %v2832 = vld [vmem:[%s7 + $0xc] sm:$0xf]
        %v2833 = vld [vmem:[%s7 + $0x10] sm:$0xf]
        %v2834 = vld [vmem:[%s7 + $0x14] sm:$0xf]
        %v2835 = vld [vmem:[%s7 + $0x18] sm:$0xf]
        %v2836 = vld [vmem:[%s7 + $0x1c] sm:$0xf]
        %v2837 = vld [vmem:[%s7 + $0x20] sm:$0xf]
        %v2838 = vld [vmem:[%s7 + $0x24] sm:$0xf]
        %v2839 = vld [vmem:[%s7 + $0x28] sm:$0xf]
        %v2840 = vld [vmem:[%s7 + $0x2c] sm:$0xf]
        %v2841 = vld [vmem:[%s7 + $0x30] sm:$0xf]
        %v2842 = vld [vmem:[%s7 + $0x34] sm:$0xf]
        %v2843 = vld [vmem:[%s7 + $0x38] sm:$0xf]
        %v2844 = vld [vmem:[%s7 + $0x3c] sm:$0xf]
        %v2845 = vld [vmem:[%s8] sm:$0x1]
        %v2847 = vlaneseq
        %v2848 = vshrl.u32 %v2847, 7
        %v2849 = vsub.s32 0, %v2848
        %v2850 = vrot.slane %v2845, %v2849
        %v2868 = vunpack.c.l.b16 %v2829
        %v2869 = vunpack.c.l.b16 %v2830
        %v2870 = vunpack.c.l.b16 %v2831
        %v2871 = vunpack.c.l.b16 %v2832
        %v2872 = vunpack.c.l.b16 %v2833
        %v2873 = vunpack.c.l.b16 %v2834
        %v2874 = vunpack.c.l.b16 %v2835
        %v2875 = vunpack.c.l.b16 %v2836
        %v2876 = vunpack.c.l.b16 %v2837
        %v2877 = vunpack.c.l.b16 %v2838
        %v2878 = vunpack.c.l.b16 %v2839
        %v2879 = vunpack.c.l.b16 %v2840
        %v2880 = vunpack.c.l.b16 %v2841
        %v2881 = vunpack.c.l.b16 %v2842
        %v2882 = vunpack.c.l.b16 %v2843
        %v2883 = vunpack.c.l.b16 %v2844
        %v2884 = vpack.c.b16 %v2869, %v2868
        %v2885 = vpack.c.b16 %v2871, %v2870
        %v2886 = vpack.c.b16 %v2873, %v2872
        %v2887 = vpack.c.b16 %v2875, %v2874
        %v2888 = vpack.c.b16 %v2877, %v2876
        %v2889 = vpack.c.b16 %v2879, %v2878
        %v2890 = vpack.c.b16 %v2881, %v2880
        %v2891 = vpack.c.b16 %v2883, %v2882
        %2900 = vmatprep.subr.bf16.mxu0 0
        %2901 = vmatpush1.bf16.msra.mxu0 %v2884
        %2902 = vmatprep.subr.bf16.mxu0 0
        %2903 = vmatpush1.bf16.msra.mxu0 %v2885
        %2904 = vmatprep.subr.bf16.mxu0 0
        %2905 = vmatpush1.bf16.msra.mxu0 %v2886
        %2906 = vmatprep.subr.bf16.mxu0 0
        %2907 = vmatpush1.bf16.msra.mxu0 %v2887
        %2908 = vmatprep.subr.bf16.mxu0 0
        %2909 = vmatpush1.bf16.msra.mxu0 %v2888
        %2910 = vmatprep.subr.bf16.mxu0 0
        %2911 = vmatpush1.bf16.msra.mxu0 %v2889
        %2912 = vmatprep.subr.bf16.mxu0 0
        %2913 = vmatpush1.bf16.msra.mxu0 %v2890
        %2914 = vmatprep.subr.bf16.mxu0 0
        %2915 = vmatpush1.bf16.msra.mxu0 %v2891
        %2916 = vmatprep.subr.bf16.mxu0 0
        %2917 = vmatpush1.bf16.msra.mxu0 0
        %2918 = vmatprep.subr.bf16.mxu0 0
        %2919 = vmatpush1.bf16.msra.mxu0 0
        %2920 = vmatprep.subr.bf16.mxu0 0
        %2921 = vmatpush1.bf16.msra.mxu0 0
        %2922 = vmatprep.subr.bf16.mxu0 0
        %2923 = vmatpush1.bf16.msra.mxu0 0
        %2924 = vmatprep.subr.bf16.mxu0 0
        %2925 = vmatpush1.bf16.msra.mxu0 0
        %2926 = vmatprep.subr.bf16.mxu0 0
        %2927 = vmatpush1.bf16.msra.mxu0 0
        %2928 = vmatprep.subr.bf16.mxu0 0
        %2929 = vmatpush1.bf16.msra.mxu0 0
        %2930 = vmatprep.subr.bf16.mxu0 0
        %2931 = vmatpush1.bf16.msra.mxu0 0
        %2932 = vmatprep.mubr.bf16.mxu0 0
        %2933 = vmatmul.mubr.bf16.gmra.mrb[0].mxu0 %v2828
        %v2934 = vpop.f32.mrb[0].mxu0
        %v2935 = vadd.f32 %v2850, %v2934
        %v2936 = vpop.f32.mrb[0].mxu0
        %v2937 = vpop.f32.mrb[0].mxu0
        %v2938 = vpop.f32.mrb[0].mxu0
        %2939 = vdwg.mxu0
        %2940 = vst [vmem:[%s452] sm:$0xff] %v2935
        %v2941 = vld [vmem:[%s9] sm:$0x3]
        %2943 = vset.pattern.permute.xlu0 0
        %2944 = vperm.xlu0 %2943, %v2935
        %v2945 = vpop.permute.xlu0 %2944
        %v2947 = vlaneseq
        %v2948 = vshrl.u32 %v2947, 7
        %v2949 = vsub.s32 0, %v2948
        %v2950 = vrot.slane %v2941, %v2949
        %v2951 = vmul.f32 %v2945, %v2950
        %2952 = vset.pattern.permute.xlu0 1
        %2953 = vperm.xlu0 %2952, %v2935
        %v2954 = vpop.permute.xlu0 %2953
        %v2956 = vlaneseq
        %v2957 = vshrl.u32 %v2956, 7
        %v2958 = vsub.s32 1, %v2957
        %v2959 = vrot.slane %v2941, %v2958
        %v2960 = vmul.f32 %v2954, %v2959
        %v2961 = vadd.f32 %v2951, %v2960
        %v2962 = vld [vmem:[%s10] sm:$0x1]
        %v2964 = vlaneseq
        %v2965 = vshrl.u32 %v2964, 7
        %v2966 = vsub.s32 0, %v2965
        %v2967 = vrot.slane %v2962, %v2966
        %v2969 = vadd.f32 %v2961, %v2967
        %v2970 = vlaneseq
        %v2971 = vand.u32 %v2970, 127
        %vm2972 = vcmp.lt.s32.totalorder %v2971, 10
        %v2973 = vsel %vm2972, %v2969, -1e+30
        %2974 = vmax.xlane.f32.xlu0 %v2973
        %v2975 = vpop.xlane.xlu0 %2974
        %v2976 = vsub.f32 %v2969, %v2975
        %v2977 = vmul.f32 %v2976, 1.442695
        %v2978 = vpow.pop %v2977
        %v2979 = vsel %vm2972, %v2978, 0.0
        %2980 = vadd.xlane.f32.xlu0 %v2979
        %v2981 = vpop.xlane.xlu0 %2980
        %v2982 = vrcp.pop %v2981
        %v2983 = vmul.f32 %v2979, %v2982
        %2984 = vst [vmem:[%s437] sm:$0xff] %v2983
        %s2985 = sand.u32 %s273, 1
        %s2986 = scalar_lea.sflag [#allocation4], %s2985
        %s2987 = sand.u32 %s273, 1
        %s2988 = smul.addr %s2987, 8
        %s2989 = scalar_lea.vmem [#allocation7], %s2988
        %p2990 = scmp.lt.s32.totalorder %s29, 1
        %s2991 = scalar_select %p2990, %s29, 1
        %s2992 = smul.addr %s2991, 8
        %s2993 = scalar_lea.vmem %s12, %s2992
        // Predicated region
        $region73: #{net_forward.1} parent=63 // pred_check
          %p2994 = pneg %p283
        $region74: #{net_forward.1} parent=63 // pred_check_branch
          %2996 = sbr.rel (%p2994) target = $region76
        $region75: #{net_forward.1} parent=63 // pred_region
          %s2998 = ssub.s32 128, 128
          %2999 = vsyncadd %s2986, %s2998
          %s3000 = smul.addr %s29, 128
          %s3001 = scalar_lea.hbm %s11, %s3000
          %s3003 = sshll.u32 %s2989, 4
          %s3004 = int_to_ptr.vmem [resolvable:$true] %s3003
          %3006 = dma.vmem_to_hbm [thread:$0]  %s3004, 128, %s3001, %s2986
        $region76: #{net_forward.1} parent=63 // pred_fallthru
          _
        // Predicated region
        $region77: #{net_forward.1} parent=63 // pred_check
          %p3007 = pneg %p309
        $region78: #{net_forward.1} parent=63 // pred_check_branch
          %3009 = sbr.rel (%p3007) target = $region80
        $region79: #{net_forward.1} parent=63 // pred_region
          _
        $region80: #{net_forward.1} parent=63 // pred_fallthru
          _
      $region64: #{net_forward.1} parent=5 // pred_fallthru
        _
      %p3010 = scmp.le.s32.totalorder 2, %s24
      // Predicated region
      $region81: #{net_forward.1} parent=5 // pred_check
        %p3011 = pneg %p3010
      $region82: #{net_forward.1} parent=5 // pred_check_branch
        %3013 = sbr.rel (%p3011) target = $region84
      $region83: #{net_forward.1} parent=5 // pred_region
        %s3014 = ssub.s32 %s24, 2
        // Predicated region
        $region85: #{net_forward.1} parent=83 // pred_check
          %p3015 = pneg %p289
        $region86: #{net_forward.1} parent=83 // pred_check_branch
          %3017 = sbr.rel (%p3015) target = $region88
        $region87: #{net_forward.1} parent=83 // pred_region
          %s3018 = sand.u32 %s274, 1
          %s3019 = scalar_lea.sflag [#allocation4], %s3018
          %s3020 = sand.u32 %s274, 1
          %s3021 = smul.addr %s3020, 8
          %s3022 = scalar_lea.vmem [#allocation7], %s3021
          %3023 = dma.done %s3019, 128
        $region88: #{net_forward.1} parent=83 // pred_fallthru
          _
        // Predicated region
        $region89: #{net_forward.1} parent=83 // pred_check
          %p3024 = pneg %p315
        $region90: #{net_forward.1} parent=83 // pred_check_branch
          %3026 = sbr.rel (%p3024) target = $region92
        $region91: #{net_forward.1} parent=83 // pred_region
          %p3027 = scmp.lt.s32.totalorder %s30, 1
          %s3028 = scalar_select %p3027, %s30, 1
          %s3029 = smul.addr %s3028, 8
          %s3030 = scalar_lea.vmem %s12, %s3029
        $region92: #{net_forward.1} parent=83 // pred_fallthru
          _
      $region84: #{net_forward.1} parent=5 // pred_fallthru
        _
    $region6: #{net_forward.1} parent=1 // loop_footer
      %s28 = sadd.s32 1, %s24
    $region7: #{net_forward.1} parent=1 // loop_footer_branch
      %23 = sbr.rel target = $region3
    $region8: #{net_forward.1} parent=1 // loop_exit
      _
    %3031 = vsyncpa [#allocation3], 1
    %s3032 = scalar_lea.sflag [#allocation3], 1
    %3033 = vsyncpa %s3032, 1
    %3034 = vsyncpa [#allocation6], 1
    %3035 = vsyncpa [#allocation4], 1
    %s3036 = scalar_lea.sflag [#allocation4], 1
    %3037 = vsyncpa %s3036, 1

</llo_original>
